<compile_context>
chip_gen: v6e
topology: v6e:2x2x1
jax: 0.10.0
libtpu: 0.0.40
codegen_flags: <defaults>
</compile_context>

<pallas_src>
import functools

import jax
import jax.numpy as jnp
from jax.experimental import pallas as pl
from jax.experimental.pallas import tpu as pltpu

_LANE = 128


def _mlp4_kernel(x_ref, w1_ref, b1_ref, w2_ref, b2_ref, w3_ref, b3_ref, o_ref):
    # x arrives f32 (no wrapper cast pass); bf16 operands -> native MXU path,
    # f32 accumulation via preferred_element_type.  The bias dtype (bf16 on
    # v6e/v7x, f32 on v5e) selects the epilogue precision.
    x = x_ref[...].astype(jnp.bfloat16)
    h = jnp.dot(x, w1_ref[...], preferred_element_type=jnp.float32)
    h = jnp.maximum(h.astype(b1_ref.dtype) + b1_ref[...], 0.0).astype(jnp.bfloat16)
    h = jnp.dot(h, w2_ref[...], preferred_element_type=jnp.float32)
    h = jnp.maximum(h.astype(b2_ref.dtype) + b2_ref[...], 0.0).astype(jnp.bfloat16)
    h = jnp.dot(h, w3_ref[...], preferred_element_type=jnp.float32)
    # Final epilogue stays f32 (matches output dtype; padded lanes are 0).
    o_ref[...] = jnp.maximum(h + b3_ref[...], 0.0).astype(o_ref.dtype)


def _chip_traits():
    """Returns (two_tensorcores, wide_mxu, bf16_vpu) for the local TPU."""
    kind = ""
    try:
        kind = jax.devices()[0].device_kind.lower()
    except Exception:
        pass
    is_v7 = ("v7" in kind) or ("7x" in kind) or kind.startswith("tpu7")
    is_v6 = ("v6" in kind) or ("trillium" in kind)
    two_cores = is_v7                 # v7x: 2 TensorCores per chip
    wide_mxu = is_v6 or is_v7         # 256-wide MXU (v5e MXU is 128-wide)
    bf16_vpu = is_v6 or is_v7         # v5e VPU has no bf16 ALUs
    return two_cores, wide_mxu, bf16_vpu


def _pick_tm(m, requested, *, two_cores, wide_mxu):
    """Row tile: MXU-aligned, a single full block on 1-TC chips when M fits,
    and a 2-way split only where it buys megacore sharding (v7x)."""
    mxu_rows = 256 if wide_mxu else 128
    if m <= requested:
        if two_cores and m > 16:
            # >=2 grid steps so the "parallel" row axis shards across both TCs.
            return max(8, ((pl.cdiv(m, 2) + 7) // 8) * 8)
        return m                      # one full-extent block (always legal)
    tm = (min(requested, m) // mxu_rows) * mxu_rows
    return max(mxu_rows, tm)


@functools.partial(
    jax.jit, static_argnames=("tm", "two_cores", "wide_mxu", "epilogue_dtype"))
def mlp4_forward(x, params, *, tm=1024, two_cores=False, wide_mxu=True,
                 epilogue_dtype=jnp.float32):
    """x: (N, P, 2F) float32 -> (N, P, F) float32 (eval-mode BN folded)."""
    w1, b1, w2, b2, w3, b3 = params
    N, P, C_in = x.shape
    H = w1.shape[1]
    F_out = w3.shape[1]
    F_pad = max(_LANE, pl.cdiv(F_out, _LANE) * _LANE)   # lane-dense output

    M = N * P
    tm_eff = _pick_tm(M, tm, two_cores=two_cores, wide_mxu=wide_mxu)
    n_blocks = pl.cdiv(M, tm_eff)

    # Metadata-only reshape; x stays f32 in HBM and is cast inside the kernel.
    x2d = x.reshape(M, C_in)

    # Weights/biases are tiny (<1.5 MiB); casting/padding them here is noise.
    w1b = w1.astype(jnp.bfloat16)
    w2b = w2.astype(jnp.bfloat16)
    w3b = jnp.pad(w3, ((0, 0), (0, F_pad - F_out))).astype(jnp.bfloat16)
    b1e = b1.reshape(1, H).astype(epilogue_dtype)
    b2e = b2.reshape(1, H).astype(epilogue_dtype)
    b3f = jnp.pad(b3.reshape(1, F_out), ((0, 0), (0, F_pad - F_out))
                  ).astype(jnp.float32)

    const = lambda shape: pl.BlockSpec(shape, lambda i: (0, 0))

    out2d = pl.pallas_call(
        _mlp4_kernel,
        out_shape=jax.ShapeDtypeStruct((M, F_pad), jnp.float32),
        grid_spec=pltpu.PrefetchScalarGridSpec(
            num_scalar_prefetch=0,
            grid=(n_blocks,),
            in_specs=[
                pl.BlockSpec((tm_eff, C_in), lambda i: (i, 0)),  # x rows (f32)
                const((C_in, H)),   # w1 (BN-folded, bf16)
                const((1, H)),      # b1 (epilogue dtype)
                const((H, H)),      # w2
                const((1, H)),      # b2
                const((H, F_pad)),  # w3 (lane-padded, bf16)
                const((1, F_pad)),  # b3 (f32, lane-padded)
            ],
            out_specs=pl.BlockSpec((tm_eff, F_pad), lambda i: (i, 0)),
        ),
        compiler_params=pltpu.CompilerParams(
            dimension_semantics=("parallel",),
        ),
    )(x2d, w1b, b1e, w2b, b2e, w3b, b3f)

    # Lane slice is the only wrapper copy; it is a no-op when F_out % 128 == 0.
    return out2d[:, :F_out].reshape(N, P, F_out)


def _fold_bn(w, b, gamma, beta, mean, var, eps=1e-5):
    """Fold inference-mode BatchNorm1d into a 1x1-conv weight/bias.

    w: (C_in, C_out)   b, gamma, beta, mean, var: (C_out,)
    """
    scale = gamma / jnp.sqrt(var + eps)
    w_f = w * scale[None, :]
    b_f = (b - mean) * scale + beta
    return w_f, b_f


def init_mlp4_params(key, feat_len):
    """Deterministic synthetic parameters matching the PyTorch module shapes."""
    H = 512
    c_in = 2 * feat_len
    k1, k2, k3, k4, k5, k6 = jax.random.split(key, 6)

    def uniform(k, shape, fan_in):
        bound = 1.0 / jnp.sqrt(fan_in)
        return jax.random.uniform(k, shape, jnp.float32, -bound, bound)

    # Conv1d(k=1) weights stored as (C_in, C_out) so the kernel does x @ W.
    w1 = uniform(k1, (c_in, H), c_in)
    b1 = uniform(k2, (H,), c_in)
    w2 = uniform(k3, (H, H), H)
    b2 = uniform(k4, (H,), H)
    w3 = uniform(k5, (H, feat_len), H)
    b3 = uniform(k6, (feat_len,), H)

    # BatchNorm1d default params / running stats (inference mode).
    # TODO(synk): training-mode BN (batch statistics) is not representable in
    # this folded-eval formulation.
    def bn(c):
        return (jnp.ones((c,), jnp.float32), jnp.zeros((c,), jnp.float32),
                jnp.zeros((c,), jnp.float32), jnp.ones((c,), jnp.float32))

    g1, be1, m1, v1 = bn(H)
    g2, be2, m2, v2 = bn(H)
    g3, be3, m3, v3 = bn(feat_len)

    w1f, b1f = _fold_bn(w1, b1, g1, be1, m1, v1)
    w2f, b2f = _fold_bn(w2, b2, g2, be2, m2, v2)
    w3f, b3f = _fold_bn(w3, b3, g3, be3, m3, v3)
    return (w1f, b1f, w2f, b2f, w3f, b3f)


def mlp4_reference(x2d, params, *, epilogue_dtype=jnp.float32):
    """Pure-JAX reference with the kernel's exact precision recipe."""
    w1, b1, w2, b2, w3, b3 = params
    bf16, f32 = jnp.bfloat16, jnp.float32
    e = epilogue_dtype
    h = jnp.dot(x2d.astype(bf16), w1.astype(bf16), preferred_element_type=f32)
    h = jnp.maximum(h.astype(e) + b1.astype(e), 0.0).astype(bf16)
    h = jnp.dot(h, w2.astype(bf16), preferred_element_type=f32)
    h = jnp.maximum(h.astype(e) + b2.astype(e), 0.0).astype(bf16)
    h = jnp.dot(h, w3.astype(bf16), preferred_element_type=f32)
    return jnp.maximum(h + b3, 0.0)


if __name__ == "__main__":
    # Small shapes consistent with the module: feat_len=32, B=2, P=8
    #   -> x: (B*P, P, 2*feat_len) = (16, 8, 64)
    feat_len = 32
    B, P = 2, 8
    N = B * P

    key = jax.random.PRNGKey(0)
    kx, kp = jax.random.split(key)
    x = jax.random.normal(kx, (N, P, 2 * feat_len), dtype=jnp.float32)
    params = init_mlp4_params(kp, feat_len)

    two_cores, wide_mxu, bf16_vpu = _chip_traits()
    e_dt = jnp.bfloat16 if bf16_vpu else jnp.float32

    out = mlp4_forward(x, params, tm=1024, two_cores=two_cores,
                       wide_mxu=wide_mxu, epilogue_dtype=e_dt)
    out = jax.block_until_ready(out)
    assert out.shape == (N, P, feat_len), out.shape

    ref = mlp4_reference(x.reshape(N * P, 2 * feat_len), params,
                         epilogue_dtype=e_dt).reshape(N, P, feat_len)
    err = float(jnp.max(jnp.abs(out - ref)))
    assert jnp.allclose(out, ref, atol=2e-2, rtol=2e-2), err

    print("KERNEL_OK")
</pallas_src>

<mosaic_0001>
module attributes {stable_mosaic.version = 11 : i64} {
  func.func @_mlp4_kernel(%arg0: i32, %arg1: memref<128x64xf32, #tpu.memory_space<vmem>>, %arg2: memref<64x512xbf16, #tpu.memory_space<vmem>>, %arg3: memref<1x512xf32, #tpu.memory_space<vmem>>, %arg4: memref<512x512xbf16, #tpu.memory_space<vmem>>, %arg5: memref<1x512xf32, #tpu.memory_space<vmem>>, %arg6: memref<512x128xbf16, #tpu.memory_space<vmem>>, %arg7: memref<1x128xf32, #tpu.memory_space<vmem>>, %arg8: memref<128x128xf32, #tpu.memory_space<vmem>>) attributes {dimension_semantics = [#tpu.dimension_semantics<parallel>], iteration_bounds = array<i64: 1>, scalar_prefetch = 0 : i64, scratch_operands = 0 : i64, tpu.core_type = #tpu.core_type<tc>, window_params = [{transform_indices = @transform_0, window_bounds = array<i64: 128, 64>}, {pipeline_mode = #tpu.pipeline_mode<synchronous>, transform_indices = @transform_1, window_bounds = array<i64: 64, 512>}, {pipeline_mode = #tpu.pipeline_mode<synchronous>, transform_indices = @transform_2, window_bounds = array<i64: 1, 512>}, {pipeline_mode = #tpu.pipeline_mode<synchronous>, transform_indices = @transform_3, window_bounds = array<i64: 512, 512>}, {pipeline_mode = #tpu.pipeline_mode<synchronous>, transform_indices = @transform_4, window_bounds = array<i64: 1, 512>}, {pipeline_mode = #tpu.pipeline_mode<synchronous>, transform_indices = @transform_5, window_bounds = array<i64: 512, 128>}, {pipeline_mode = #tpu.pipeline_mode<synchronous>, transform_indices = @transform_6, window_bounds = array<i64: 1, 128>}, {transform_indices = @transform_7, window_bounds = array<i64: 128, 128>}]} {
    %c0 = arith.constant 0 : index
    %c0_0 = arith.constant 0 : index
    %0 = vector.load %arg1[%c0, %c0_0] : memref<128x64xf32, #tpu.memory_space<vmem>>, vector<128x64xf32>
    %1 = arith.truncf %0 : vector<128x64xf32> to vector<128x64xbf16>
    %c0_1 = arith.constant 0 : index
    %c0_2 = arith.constant 0 : index
    %2 = vector.load %arg2[%c0_1, %c0_2] : memref<64x512xbf16, #tpu.memory_space<vmem>>, vector<64x512xbf16>
    %cst = arith.constant dense<0.000000e+00> : vector<128x512xf32>
    %3 = tpu.matmul %1, %2, %cst {dimension_numbers = #tpu.dot_dimension_numbers<[1], [0], [0], [1], [0, 0, 1, 1], [], []>} : vector<128x64xbf16>, vector<64x512xbf16>, vector<128x512xf32> -> vector<128x512xf32>
    %c0_3 = arith.constant 0 : index
    %c0_4 = arith.constant 0 : index
    %4 = vector.load %arg3[%c0_3, %c0_4] : memref<1x512xf32, #tpu.memory_space<vmem>>, vector<1x512xf32>
    %5 = vector.broadcast %4 : vector<1x512xf32> to vector<128x512xf32>
    %6 = arith.addf %3, %5 : vector<128x512xf32>
    %cst_5 = arith.constant 0.000000e+00 : f32
    %7 = vector.broadcast %cst_5 : f32 to vector<128x512xf32>
    %8 = arith.maximumf %6, %7 : vector<128x512xf32>
    %9 = arith.truncf %8 : vector<128x512xf32> to vector<128x512xbf16>
    %c0_6 = arith.constant 0 : index
    %c0_7 = arith.constant 0 : index
    %10 = vector.load %arg4[%c0_6, %c0_7] : memref<512x512xbf16, #tpu.memory_space<vmem>>, vector<512x512xbf16>
    %cst_8 = arith.constant dense<0.000000e+00> : vector<128x512xf32>
    %11 = tpu.matmul %9, %10, %cst_8 {dimension_numbers = #tpu.dot_dimension_numbers<[1], [0], [0], [1], [0, 0, 1, 1], [], []>} : vector<128x512xbf16>, vector<512x512xbf16>, vector<128x512xf32> -> vector<128x512xf32>
    %c0_9 = arith.constant 0 : index
    %c0_10 = arith.constant 0 : index
    %12 = vector.load %arg5[%c0_9, %c0_10] : memref<1x512xf32, #tpu.memory_space<vmem>>, vector<1x512xf32>
    %13 = vector.broadcast %12 : vector<1x512xf32> to vector<128x512xf32>
    %14 = arith.addf %11, %13 : vector<128x512xf32>
    %cst_11 = arith.constant 0.000000e+00 : f32
    %15 = vector.broadcast %cst_11 : f32 to vector<128x512xf32>
    %16 = arith.maximumf %14, %15 : vector<128x512xf32>
    %17 = arith.truncf %16 : vector<128x512xf32> to vector<128x512xbf16>
    %c0_12 = arith.constant 0 : index
    %c0_13 = arith.constant 0 : index
    %18 = vector.load %arg6[%c0_12, %c0_13] : memref<512x128xbf16, #tpu.memory_space<vmem>>, vector<512x128xbf16>
    %cst_14 = arith.constant dense<0.000000e+00> : vector<128x128xf32>
    %19 = tpu.matmul %17, %18, %cst_14 {dimension_numbers = #tpu.dot_dimension_numbers<[1], [0], [0], [1], [0, 0, 1, 1], [], []>} : vector<128x512xbf16>, vector<512x128xbf16>, vector<128x128xf32> -> vector<128x128xf32>
    %c0_15 = arith.constant 0 : index
    %c0_16 = arith.constant 0 : index
    %20 = vector.load %arg7[%c0_15, %c0_16] : memref<1x128xf32, #tpu.memory_space<vmem>>, vector<1x128xf32>
    %21 = vector.broadcast %20 : vector<1x128xf32> to vector<128x128xf32>
    %22 = arith.addf %19, %21 : vector<128x128xf32>
    %cst_17 = arith.constant 0.000000e+00 : f32
    %23 = vector.broadcast %cst_17 : f32 to vector<128x128xf32>
    %24 = arith.maximumf %22, %23 : vector<128x128xf32>
    %c0_18 = arith.constant 0 : index
    %c0_19 = arith.constant 0 : index
    %25 = vector.load %arg8[%c0_18, %c0_19] : memref<128x128xf32, #tpu.memory_space<vmem>>, vector<128x128xf32>
    tpu.vector_store %arg8[%c0_18, %c0_19], %24 {strides = array<i32>} : memref<128x128xf32, #tpu.memory_space<vmem>>, vector<128x128xf32>,
    return
  }
  func.func @transform_0(%arg0: i32) -> (i32, i32) {
    %c0_i32 = arith.constant 0 : i32
    %c0_i32_0 = arith.constant 0 : i32
    return %arg0, %c0_i32 : i32, i32
  }
  func.func @transform_1(%arg0: i32) -> (i32, i32) {
    %c0_i32 = arith.constant 0 : i32
    %c0_i32_0 = arith.constant 0 : i32
    %c0_i32_1 = arith.constant 0 : i32
    return %c0_i32, %c0_i32_0 : i32, i32
  }
  func.func @transform_2(%arg0: i32) -> (i32, i32) {
    %c0_i32 = arith.constant 0 : i32
    %c0_i32_0 = arith.constant 0 : i32
    %c0_i32_1 = arith.constant 0 : i32
    return %c0_i32, %c0_i32_0 : i32, i32
  }
  func.func @transform_3(%arg0: i32) -> (i32, i32) {
    %c0_i32 = arith.constant 0 : i32
    %c0_i32_0 = arith.constant 0 : i32
    %c0_i32_1 = arith.constant 0 : i32
    return %c0_i32, %c0_i32_0 : i32, i32
  }
  func.func @transform_4(%arg0: i32) -> (i32, i32) {
    %c0_i32 = arith.constant 0 : i32
    %c0_i32_0 = arith.constant 0 : i32
    %c0_i32_1 = arith.constant 0 : i32
    return %c0_i32, %c0_i32_0 : i32, i32
  }
  func.func @transform_5(%arg0: i32) -> (i32, i32) {
    %c0_i32 = arith.constant 0 : i32
    %c0_i32_0 = arith.constant 0 : i32
    %c0_i32_1 = arith.constant 0 : i32
    return %c0_i32, %c0_i32_0 : i32, i32
  }
  func.func @transform_6(%arg0: i32) -> (i32, i32) {
    %c0_i32 = arith.constant 0 : i32
    %c0_i32_0 = arith.constant 0 : i32
    %c0_i32_1 = arith.constant 0 : i32
    return %c0_i32, %c0_i32_0 : i32, i32
  }
  func.func @transform_7(%arg0: i32) -> (i32, i32) {
    %c0_i32 = arith.constant 0 : i32
    %c0_i32_0 = arith.constant 0 : i32
    return %arg0, %c0_i32 : i32, i32
  }
}

</mosaic_0001>

<llo_original>
// kernel: mlp4_forward.1
$region0: #{mlp4_forward.1}
  #allocation0 [shape = 'u32[]', space=smem, size = 0x4, offset = 0x4, fixed_abs, tag = 'smem constant byte address 0x4 - core index']
  #allocation1 [shape = 'u32[144,128]{1,0:T(1,128)}', space=vmem, size = 0x12000, scoped, tag = 'internal scratch']
  %s0 = inlined_call_operand.vmem [shape: f32[128,64], index: 0, kind: input, shape index: {}]
  %s1 = inlined_call_operand.vmem [shape: bf16[64,512], index: 1, kind: input, shape index: {}]
  %s2 = inlined_call_operand.vmem [shape: f32[1,512], index: 2, kind: input, shape index: {}]
  %s3 = inlined_call_operand.vmem [shape: bf16[512,512], index: 3, kind: input, shape index: {}]
  %s4 = inlined_call_operand.vmem [shape: f32[1,512], index: 4, kind: input, shape index: {}]
  %s5 = inlined_call_operand.vmem [shape: bf16[512,128], index: 5, kind: input, shape index: {}]
  %s6 = inlined_call_operand.vmem [shape: f32[1,128], index: 6, kind: input, shape index: {}]
  %s7 = inlined_call_operand.vmem [shape: f32[128,128], index: 7, kind: output, shape index: {}]
  %s8 = sld [smem:[#allocation0]]
  $region38: #{mlp4_forward.1} parent=0
    _
  %s10 = ssub.s32 1, %s8
  %s11 = scalar_select 0, %s10, %s8
  // Predicated region
  $region2: #{mlp4_forward.1} parent=0 // pred_check
    _
  $region3: #{mlp4_forward.1} parent=0 // pred_check_branch
    %13 = sbr.rel (0) target = $region5
  $region4: #{mlp4_forward.1} parent=0 // pred_region
    _
  $region5: #{mlp4_forward.1} parent=0 // pred_fallthru
    _
  // Predicated region
  $region6: #{mlp4_forward.1} parent=0 // pred_check
    _
  $region7: #{mlp4_forward.1} parent=0 // pred_check_branch
    %15 = sbr.rel (0) target = $region9
  $region8: #{mlp4_forward.1} parent=0 // pred_region
    _
  $region9: #{mlp4_forward.1} parent=0 // pred_fallthru
    _
  // Predicated region
  $region10: #{mlp4_forward.1} parent=0 // pred_check
    _
  $region11: #{mlp4_forward.1} parent=0 // pred_check_branch
    %17 = sbr.rel (0) target = $region13
  $region12: #{mlp4_forward.1} parent=0 // pred_region
    _
  $region13: #{mlp4_forward.1} parent=0 // pred_fallthru
    _
  // Predicated region
  $region14: #{mlp4_forward.1} parent=0 // pred_check
    _
  $region15: #{mlp4_forward.1} parent=0 // pred_check_branch
    %19 = sbr.rel (0) target = $region17
  $region16: #{mlp4_forward.1} parent=0 // pred_region
    _
  $region17: #{mlp4_forward.1} parent=0 // pred_fallthru
    _
  // Predicated region
  $region18: #{mlp4_forward.1} parent=0 // pred_check
    _
  $region19: #{mlp4_forward.1} parent=0 // pred_check_branch
    %21 = sbr.rel (0) target = $region21
  $region20: #{mlp4_forward.1} parent=0 // pred_region
    _
  $region21: #{mlp4_forward.1} parent=0 // pred_fallthru
    _
  // Predicated region
  $region22: #{mlp4_forward.1} parent=0 // pred_check
    _
  $region23: #{mlp4_forward.1} parent=0 // pred_check_branch
    %23 = sbr.rel (0) target = $region25
  $region24: #{mlp4_forward.1} parent=0 // pred_region
    _
  $region25: #{mlp4_forward.1} parent=0 // pred_fallthru
    _
  // Predicated region
  $region26: #{mlp4_forward.1} parent=0 // pred_check
    _
  $region27: #{mlp4_forward.1} parent=0 // pred_check_branch
    %25 = sbr.rel (0) target = $region29
  $region28: #{mlp4_forward.1} parent=0 // pred_region
    _
  $region29: #{mlp4_forward.1} parent=0 // pred_fallthru
    _
  %v27 = vld [vmem:[%s0] sm:$0xff]
  %v28 = vld [vmem:[%s0 + $0x8] sm:$0xff]
  %v29 = vld [vmem:[%s0 + $0x10] sm:$0xff]
  %v30 = vld [vmem:[%s0 + $0x18] sm:$0xff]
  %v31 = vld [vmem:[%s0 + $0x20] sm:$0xff]
  %v32 = vld [vmem:[%s0 + $0x28] sm:$0xff]
  %v33 = vld [vmem:[%s0 + $0x30] sm:$0xff]
  %v34 = vld [vmem:[%s0 + $0x38] sm:$0xff]
  %v35 = vld [vmem:[%s0 + $0x40] sm:$0xff]
  %v36 = vld [vmem:[%s0 + $0x48] sm:$0xff]
  %v37 = vld [vmem:[%s0 + $0x50] sm:$0xff]
  %v38 = vld [vmem:[%s0 + $0x58] sm:$0xff]
  %v39 = vld [vmem:[%s0 + $0x60] sm:$0xff]
  %v40 = vld [vmem:[%s0 + $0x68] sm:$0xff]
  %v41 = vld [vmem:[%s0 + $0x70] sm:$0xff]
  %v42 = vld [vmem:[%s0 + $0x78] sm:$0xff]
  %v43 = vpack.c.bf16 %v28, %v27
  %v44 = vpack.c.bf16 %v30, %v29
  %v45 = vpack.c.bf16 %v32, %v31
  %v46 = vpack.c.bf16 %v34, %v33
  %v47 = vpack.c.bf16 %v36, %v35
  %v48 = vpack.c.bf16 %v38, %v37
  %v49 = vpack.c.bf16 %v40, %v39
  %v50 = vpack.c.bf16 %v42, %v41
  %v51 = vld [vmem:[%s1] sm:$0xff]
  %v52 = vld [vmem:[%s1 + $0x8] sm:$0xff]
  %v53 = vld [vmem:[%s1 + $0x10] sm:$0xff]
  %v54 = vld [vmem:[%s1 + $0x18] sm:$0xff]
  %v55 = vld [vmem:[%s1 + $0x20] sm:$0xff]
  %v56 = vld [vmem:[%s1 + $0x28] sm:$0xff]
  %v57 = vld [vmem:[%s1 + $0x30] sm:$0xff]
  %v58 = vld [vmem:[%s1 + $0x38] sm:$0xff]
  %v59 = vld [vmem:[%s1 + $0x40] sm:$0xff]
  %v60 = vld [vmem:[%s1 + $0x48] sm:$0xff]
  %v61 = vld [vmem:[%s1 + $0x50] sm:$0xff]
  %v62 = vld [vmem:[%s1 + $0x58] sm:$0xff]
  %v63 = vld [vmem:[%s1 + $0x60] sm:$0xff]
  %v64 = vld [vmem:[%s1 + $0x68] sm:$0xff]
  %v65 = vld [vmem:[%s1 + $0x70] sm:$0xff]
  %v66 = vld [vmem:[%s1 + $0x78] sm:$0xff]
  %v67 = vld [vmem:[%s2] sm:$0xf]
  %v69 = vlaneseq
  %v70 = vshrl.u32 %v69, 7
  %v71 = vsub.s32 0, %v70
  %v72 = vrot.slane %v67, %v71
  %v73 = vlaneseq
  %v74 = vshrl.u32 %v73, 7
  %v75 = vsub.s32 1, %v74
  %v76 = vrot.slane %v67, %v75
  %v77 = vlaneseq
  %v78 = vshrl.u32 %v77, 7
  %v79 = vsub.s32 2, %v78
  %v80 = vrot.slane %v67, %v79
  %v81 = vlaneseq
  %v82 = vshrl.u32 %v81, 7
  %v83 = vsub.s32 3, %v82
  %v84 = vrot.slane %v67, %v83
  %v105 = vunpack.c.l.b16 %v51
  %v106 = vunpack.c.h.b16 %v51
  %v107 = vunpack.c.l.b16 %v52
  %v108 = vunpack.c.h.b16 %v52
  %v109 = vunpack.c.l.b16 %v53
  %v110 = vunpack.c.h.b16 %v53
  %v111 = vunpack.c.l.b16 %v54
  %v112 = vunpack.c.h.b16 %v54
  %v113 = vunpack.c.l.b16 %v55
  %v114 = vunpack.c.h.b16 %v55
  %v115 = vunpack.c.l.b16 %v56
  %v116 = vunpack.c.h.b16 %v56
  %v117 = vunpack.c.l.b16 %v57
  %v118 = vunpack.c.h.b16 %v57
  %v119 = vunpack.c.l.b16 %v58
  %v120 = vunpack.c.h.b16 %v58
  %v121 = vunpack.c.l.b16 %v59
  %v122 = vunpack.c.h.b16 %v59
  %v123 = vunpack.c.l.b16 %v60
  %v124 = vunpack.c.h.b16 %v60
  %v125 = vunpack.c.l.b16 %v61
  %v126 = vunpack.c.h.b16 %v61
  %v127 = vunpack.c.l.b16 %v62
  %v128 = vunpack.c.h.b16 %v62
  %v129 = vunpack.c.l.b16 %v63
  %v130 = vunpack.c.h.b16 %v63
  %v131 = vunpack.c.l.b16 %v64
  %v132 = vunpack.c.h.b16 %v64
  %v133 = vunpack.c.l.b16 %v65
  %v134 = vunpack.c.h.b16 %v65
  %v135 = vunpack.c.l.b16 %v66
  %v136 = vunpack.c.h.b16 %v66
  %v137 = vpack.c.b16 %v109, %v105
  %v138 = vpack.c.b16 %v110, %v106
  %v139 = vpack.c.b16 %v111, %v107
  %v140 = vpack.c.b16 %v112, %v108
  %v141 = vpack.c.b16 %v117, %v113
  %v142 = vpack.c.b16 %v118, %v114
  %v143 = vpack.c.b16 %v119, %v115
  %v144 = vpack.c.b16 %v120, %v116
  %v145 = vpack.c.b16 %v125, %v121
  %v146 = vpack.c.b16 %v126, %v122
  %v147 = vpack.c.b16 %v127, %v123
  %v148 = vpack.c.b16 %v128, %v124
  %v149 = vpack.c.b16 %v133, %v129
  %v150 = vpack.c.b16 %v134, %v130
  %v151 = vpack.c.b16 %v135, %v131
  %v152 = vpack.c.b16 %v136, %v132
  %vm169 = vcmask 523264
  %v171 = vsel %vm169, %v43, 0
  %v174 = vsel %vm169, %v44, 0
  %v177 = vsel %vm169, %v45, 0
  %v180 = vsel %vm169, %v46, 0
  %v183 = vsel %vm169, %v47, 0
  %v186 = vsel %vm169, %v48, 0
  %v189 = vsel %vm169, %v49, 0
  %v192 = vsel %vm169, %v50, 0
  %194 = vmatprep.subr.bf16.mxu0 0
  %195 = vmatpush1.bf16.msra.mxu0 0
  %196 = vmatprep.subr.bf16.mxu0 0
  %197 = vmatpush1.bf16.msra.mxu0 0
  %198 = vmatprep.subr.bf16.mxu0 0
  %199 = vmatpush1.bf16.msra.mxu0 0
  %200 = vmatprep.subr.bf16.mxu0 0
  %201 = vmatpush1.bf16.msra.mxu0 0
  %202 = vmatprep.subr.bf16.mxu0 %v150
  %203 = vmatpush1.bf16.msra.mxu0 %v149
  %204 = vmatprep.subr.bf16.mxu0 %v146
  %205 = vmatpush1.bf16.msra.mxu0 %v145
  %206 = vmatprep.subr.bf16.mxu0 %v142
  %207 = vmatpush1.bf16.msra.mxu0 %v141
  %208 = vmatprep.subr.bf16.mxu0 %v138
  %209 = vmatpush1.bf16.msra.mxu0 %v137
  %210 = vmatprep.subr.bf16.mxu0 0
  %211 = vmatpush2.bf16.msra.mxu0 0
  %212 = vmatprep.subr.bf16.mxu0 0
  %213 = vmatpush2.bf16.msra.mxu0 0
  %214 = vmatprep.subr.bf16.mxu0 0
  %215 = vmatpush2.bf16.msra.mxu0 0
  %216 = vmatprep.subr.bf16.mxu0 0
  %217 = vmatpush2.bf16.msra.mxu0 0
  %218 = vmatprep.subr.bf16.mxu0 0
  %219 = vmatpush2.bf16.msra.mxu0 0
  %220 = vmatprep.subr.bf16.mxu0 0
  %221 = vmatpush2.bf16.msra.mxu0 0
  %222 = vmatprep.subr.bf16.mxu0 0
  %223 = vmatpush2.bf16.msra.mxu0 0
  %224 = vmatprep.subr.bf16.mxu0 0
  %225 = vmatpush2.bf16.msra.mxu0 0
  %226 = vmatprep.mubr.bf16.mxu0 0
  %227 = vmatmul.mubr.bf16.gmra.mxu0 %v171
  %v228 = vpop.f32.mrf.mxu0
  %v229 = vadd.f32 %v72, %v228
  %v230 = vpop.f32.mrf.mxu0
  %v231 = vadd.f32 %v76, %v230
  %v232 = vpop.f32.mrf.mxu0
  %v233 = vadd.f32 %v72, %v232
  %v234 = vpop.f32.mrf.mxu0
  %v235 = vadd.f32 %v76, %v234
  %236 = vmatprep.mubr.bf16.mxu0 0
  %237 = vmatmul.mubr.bf16.gmra.mxu0 %v174
  %v238 = vpop.f32.mrf.mxu0
  %v239 = vadd.f32 %v72, %v238
  %v240 = vpop.f32.mrf.mxu0
  %v241 = vadd.f32 %v76, %v240
  %v242 = vpop.f32.mrf.mxu0
  %v243 = vadd.f32 %v72, %v242
  %v244 = vpop.f32.mrf.mxu0
  %v245 = vadd.f32 %v76, %v244
  %246 = vmatprep.mubr.bf16.mxu0 0
  %247 = vmatmul.mubr.bf16.gmra.mxu0 %v177
  %v248 = vpop.f32.mrf.mxu0
  %v249 = vadd.f32 %v72, %v248
  %v250 = vpop.f32.mrf.mxu0
  %v251 = vadd.f32 %v76, %v250
  %v252 = vpop.f32.mrf.mxu0
  %v253 = vadd.f32 %v72, %v252
  %v254 = vpop.f32.mrf.mxu0
  %v255 = vadd.f32 %v76, %v254
  %256 = vmatprep.mubr.bf16.mxu0 0
  %257 = vmatmul.mubr.bf16.gmra.mxu0 %v180
  %v258 = vpop.f32.mrf.mxu0
  %v259 = vadd.f32 %v72, %v258
  %v260 = vpop.f32.mrf.mxu0
  %v261 = vadd.f32 %v76, %v260
  %v262 = vpop.f32.mrf.mxu0
  %v263 = vadd.f32 %v72, %v262
  %v264 = vpop.f32.mrf.mxu0
  %v265 = vadd.f32 %v76, %v264
  %266 = vmatprep.mubr.bf16.mxu0 0
  %267 = vmatmul.mubr.bf16.gmra.mxu0 %v183
  %v268 = vpop.f32.mrf.mxu0
  %v269 = vadd.f32 %v72, %v268
  %v270 = vpop.f32.mrf.mxu0
  %v271 = vadd.f32 %v76, %v270
  %v272 = vpop.f32.mrf.mxu0
  %v273 = vadd.f32 %v72, %v272
  %v274 = vpop.f32.mrf.mxu0
  %v275 = vadd.f32 %v76, %v274
  %276 = vmatprep.mubr.bf16.mxu0 0
  %277 = vmatmul.mubr.bf16.gmra.mxu0 %v186
  %v278 = vpop.f32.mrf.mxu0
  %v279 = vadd.f32 %v72, %v278
  %v280 = vpop.f32.mrf.mxu0
  %v281 = vadd.f32 %v76, %v280
  %v282 = vpop.f32.mrf.mxu0
  %v283 = vadd.f32 %v72, %v282
  %v284 = vpop.f32.mrf.mxu0
  %v285 = vadd.f32 %v76, %v284
  %286 = vmatprep.mubr.bf16.mxu0 0
  %287 = vmatmul.mubr.bf16.gmra.mxu0 %v189
  %v288 = vpop.f32.mrf.mxu0
  %v289 = vadd.f32 %v72, %v288
  %v290 = vpop.f32.mrf.mxu0
  %v291 = vadd.f32 %v76, %v290
  %v292 = vpop.f32.mrf.mxu0
  %v293 = vadd.f32 %v72, %v292
  %v294 = vpop.f32.mrf.mxu0
  %v295 = vadd.f32 %v76, %v294
  %296 = vmatprep.mubr.bf16.mxu0 0
  %297 = vmatmul.mubr.bf16.gmra.mxu0 %v192
  %v298 = vpop.f32.mrf.mxu0
  %v299 = vadd.f32 %v72, %v298
  %v300 = vpop.f32.mrf.mxu0
  %v301 = vadd.f32 %v76, %v300
  %v302 = vpop.f32.mrf.mxu0
  %v303 = vadd.f32 %v72, %v302
  %v304 = vpop.f32.mrf.mxu0
  %v305 = vadd.f32 %v76, %v304
  %306 = vdwg.mxu0
  %307 = vmatprep.subr.bf16.mxu0 0
  %308 = vmatpush1.bf16.msra.mxu0 0
  %309 = vmatprep.subr.bf16.mxu0 0
  %310 = vmatpush1.bf16.msra.mxu0 0
  %311 = vmatprep.subr.bf16.mxu0 0
  %312 = vmatpush1.bf16.msra.mxu0 0
  %313 = vmatprep.subr.bf16.mxu0 0
  %314 = vmatpush1.bf16.msra.mxu0 0
  %315 = vmatprep.subr.bf16.mxu0 %v152
  %316 = vmatpush1.bf16.msra.mxu0 %v151
  %317 = vmatprep.subr.bf16.mxu0 %v148
  %318 = vmatpush1.bf16.msra.mxu0 %v147
  %319 = vmatprep.subr.bf16.mxu0 %v144
  %320 = vmatpush1.bf16.msra.mxu0 %v143
  %321 = vmatprep.subr.bf16.mxu0 %v140
  %322 = vmatpush1.bf16.msra.mxu0 %v139
  %323 = vmatprep.subr.bf16.mxu0 0
  %324 = vmatpush2.bf16.msra.mxu0 0
  %325 = vmatprep.subr.bf16.mxu0 0
  %326 = vmatpush2.bf16.msra.mxu0 0
  %327 = vmatprep.subr.bf16.mxu0 0
  %328 = vmatpush2.bf16.msra.mxu0 0
  %329 = vmatprep.subr.bf16.mxu0 0
  %330 = vmatpush2.bf16.msra.mxu0 0
  %331 = vmatprep.subr.bf16.mxu0 0
  %332 = vmatpush2.bf16.msra.mxu0 0
  %333 = vmatprep.subr.bf16.mxu0 0
  %334 = vmatpush2.bf16.msra.mxu0 0
  %335 = vmatprep.subr.bf16.mxu0 0
  %336 = vmatpush2.bf16.msra.mxu0 0
  %337 = vmatprep.subr.bf16.mxu0 0
  %338 = vmatpush2.bf16.msra.mxu0 0
  %339 = vmatprep.mubr.bf16.mxu0 0
  %340 = vmatmul.mubr.bf16.gmra.mxu0 %v171
  %v341 = vpop.f32.mrf.mxu0
  %v342 = vadd.f32 %v80, %v341
  %v343 = vpop.f32.mrf.mxu0
  %v344 = vadd.f32 %v84, %v343
  %v345 = vpop.f32.mrf.mxu0
  %v346 = vadd.f32 %v80, %v345
  %v347 = vpop.f32.mrf.mxu0
  %v348 = vadd.f32 %v84, %v347
  %349 = vmatprep.mubr.bf16.mxu0 0
  %350 = vmatmul.mubr.bf16.gmra.mxu0 %v174
  %v351 = vpop.f32.mrf.mxu0
  %v352 = vadd.f32 %v80, %v351
  %v353 = vpop.f32.mrf.mxu0
  %v354 = vadd.f32 %v84, %v353
  %v355 = vpop.f32.mrf.mxu0
  %v356 = vadd.f32 %v80, %v355
  %v357 = vpop.f32.mrf.mxu0
  %v358 = vadd.f32 %v84, %v357
  %359 = vmatprep.mubr.bf16.mxu0 0
  %360 = vmatmul.mubr.bf16.gmra.mxu0 %v177
  %v361 = vpop.f32.mrf.mxu0
  %v362 = vadd.f32 %v80, %v361
  %v363 = vpop.f32.mrf.mxu0
  %v364 = vadd.f32 %v84, %v363
  %v365 = vpop.f32.mrf.mxu0
  %v366 = vadd.f32 %v80, %v365
  %v367 = vpop.f32.mrf.mxu0
  %v368 = vadd.f32 %v84, %v367
  %369 = vmatprep.mubr.bf16.mxu0 0
  %370 = vmatmul.mubr.bf16.gmra.mxu0 %v180
  %v371 = vpop.f32.mrf.mxu0
  %v372 = vadd.f32 %v80, %v371
  %v373 = vpop.f32.mrf.mxu0
  %v374 = vadd.f32 %v84, %v373
  %v375 = vpop.f32.mrf.mxu0
  %v376 = vadd.f32 %v80, %v375
  %v377 = vpop.f32.mrf.mxu0
  %v378 = vadd.f32 %v84, %v377
  %379 = vmatprep.mubr.bf16.mxu0 0
  %380 = vmatmul.mubr.bf16.gmra.mxu0 %v183
  %v381 = vpop.f32.mrf.mxu0
  %v382 = vadd.f32 %v80, %v381
  %v383 = vpop.f32.mrf.mxu0
  %v384 = vadd.f32 %v84, %v383
  %v385 = vpop.f32.mrf.mxu0
  %v386 = vadd.f32 %v80, %v385
  %v387 = vpop.f32.mrf.mxu0
  %v388 = vadd.f32 %v84, %v387
  %389 = vmatprep.mubr.bf16.mxu0 0
  %390 = vmatmul.mubr.bf16.gmra.mxu0 %v186
  %v391 = vpop.f32.mrf.mxu0
  %v392 = vadd.f32 %v80, %v391
  %v393 = vpop.f32.mrf.mxu0
  %v394 = vadd.f32 %v84, %v393
  %v395 = vpop.f32.mrf.mxu0
  %v396 = vadd.f32 %v80, %v395
  %v397 = vpop.f32.mrf.mxu0
  %v398 = vadd.f32 %v84, %v397
  %399 = vmatprep.mubr.bf16.mxu0 0
  %400 = vmatmul.mubr.bf16.gmra.mxu0 %v189
  %v401 = vpop.f32.mrf.mxu0
  %v402 = vadd.f32 %v80, %v401
  %v403 = vpop.f32.mrf.mxu0
  %v404 = vadd.f32 %v84, %v403
  %v405 = vpop.f32.mrf.mxu0
  %v406 = vadd.f32 %v80, %v405
  %v407 = vpop.f32.mrf.mxu0
  %v408 = vadd.f32 %v84, %v407
  %409 = vmatprep.mubr.bf16.mxu0 0
  %410 = vmatmul.mubr.bf16.gmra.mxu0 %v192
  %v411 = vpop.f32.mrf.mxu0
  %v412 = vadd.f32 %v80, %v411
  %v413 = vpop.f32.mrf.mxu0
  %v414 = vadd.f32 %v84, %v413
  %v415 = vpop.f32.mrf.mxu0
  %v416 = vadd.f32 %v80, %v415
  %v417 = vpop.f32.mrf.mxu0
  %v418 = vadd.f32 %v84, %v417
  %419 = vdwg.mxu0
  %v420 = vmax.f32 %v229, 0.0
  %v421 = vmax.f32 %v231, 0.0
  %v422 = vmax.f32 %v342, 0.0
  %v423 = vmax.f32 %v344, 0.0
  %v424 = vmax.f32 %v233, 0.0
  %v425 = vmax.f32 %v235, 0.0
  %v426 = vmax.f32 %v346, 0.0
  %v427 = vmax.f32 %v348, 0.0
  %v428 = vmax.f32 %v239, 0.0
  %v429 = vmax.f32 %v241, 0.0
  %v430 = vmax.f32 %v352, 0.0
  %v431 = vmax.f32 %v354, 0.0
  %v432 = vmax.f32 %v243, 0.0
  %v433 = vmax.f32 %v245, 0.0
  %v434 = vmax.f32 %v356, 0.0
  %v435 = vmax.f32 %v358, 0.0
  %v436 = vmax.f32 %v249, 0.0
  %v437 = vmax.f32 %v251, 0.0
  %v438 = vmax.f32 %v362, 0.0
  %v439 = vmax.f32 %v364, 0.0
  %v440 = vmax.f32 %v253, 0.0
  %v441 = vmax.f32 %v255, 0.0
  %v442 = vmax.f32 %v366, 0.0
  %v443 = vmax.f32 %v368, 0.0
  %v444 = vmax.f32 %v259, 0.0
  %v445 = vmax.f32 %v261, 0.0
  %v446 = vmax.f32 %v372, 0.0
  %v447 = vmax.f32 %v374, 0.0
  %v448 = vmax.f32 %v263, 0.0
  %v449 = vmax.f32 %v265, 0.0
  %v450 = vmax.f32 %v376, 0.0
  %v451 = vmax.f32 %v378, 0.0
  %v452 = vmax.f32 %v269, 0.0
  %v453 = vmax.f32 %v271, 0.0
  %v454 = vmax.f32 %v382, 0.0
  %v455 = vmax.f32 %v384, 0.0
  %v456 = vmax.f32 %v273, 0.0
  %v457 = vmax.f32 %v275, 0.0
  %v458 = vmax.f32 %v386, 0.0
  %v459 = vmax.f32 %v388, 0.0
  %v460 = vmax.f32 %v279, 0.0
  %v461 = vmax.f32 %v281, 0.0
  %v462 = vmax.f32 %v392, 0.0
  %v463 = vmax.f32 %v394, 0.0
  %v464 = vmax.f32 %v283, 0.0
  %v465 = vmax.f32 %v285, 0.0
  %v466 = vmax.f32 %v396, 0.0
  %v467 = vmax.f32 %v398, 0.0
  %v468 = vmax.f32 %v289, 0.0
  %v469 = vmax.f32 %v291, 0.0
  %v470 = vmax.f32 %v402, 0.0
  %v471 = vmax.f32 %v404, 0.0
  %v472 = vmax.f32 %v293, 0.0
  %v473 = vmax.f32 %v295, 0.0
  %v474 = vmax.f32 %v406, 0.0
  %v475 = vmax.f32 %v408, 0.0
  %v476 = vmax.f32 %v299, 0.0
  %v477 = vmax.f32 %v301, 0.0
  %v478 = vmax.f32 %v412, 0.0
  %v479 = vmax.f32 %v414, 0.0
  %v480 = vmax.f32 %v303, 0.0
  %v481 = vmax.f32 %v305, 0.0
  %v482 = vmax.f32 %v416, 0.0
  %v483 = vmax.f32 %v418, 0.0
  %v484 = vpack.c.bf16 %v424, %v420
  %v485 = vpack.c.bf16 %v425, %v421
  %v486 = vpack.c.bf16 %v426, %v422
  %v487 = vpack.c.bf16 %v427, %v423
  %v488 = vpack.c.bf16 %v432, %v428
  %v489 = vpack.c.bf16 %v433, %v429
  %v490 = vpack.c.bf16 %v434, %v430
  %v491 = vpack.c.bf16 %v435, %v431
  %v492 = vpack.c.bf16 %v440, %v436
  %v493 = vpack.c.bf16 %v441, %v437
  %v494 = vpack.c.bf16 %v442, %v438
  %v495 = vpack.c.bf16 %v443, %v439
  %v496 = vpack.c.bf16 %v448, %v444
  %v497 = vpack.c.bf16 %v449, %v445
  %v498 = vpack.c.bf16 %v450, %v446
  %v499 = vpack.c.bf16 %v451, %v447
  %v500 = vpack.c.bf16 %v456, %v452
  %v501 = vpack.c.bf16 %v457, %v453
  %v502 = vpack.c.bf16 %v458, %v454
  %v503 = vpack.c.bf16 %v459, %v455
  %v504 = vpack.c.bf16 %v464, %v460
  %v505 = vpack.c.bf16 %v465, %v461
  %v506 = vpack.c.bf16 %v466, %v462
  %v507 = vpack.c.bf16 %v467, %v463
  %v508 = vpack.c.bf16 %v472, %v468
  %v509 = vpack.c.bf16 %v473, %v469
  %v510 = vpack.c.bf16 %v474, %v470
  %v511 = vpack.c.bf16 %v475, %v471
  %v512 = vpack.c.bf16 %v480, %v476
  %v513 = vpack.c.bf16 %v481, %v477
  %v514 = vpack.c.bf16 %v482, %v478
  %v515 = vpack.c.bf16 %v483, %v479
  %v516 = vld [vmem:[%s3] sm:$0xff]
  %v517 = vld [vmem:[%s3 + $0x8] sm:$0xff]
  %v518 = vld [vmem:[%s3 + $0x10] sm:$0xff]
  %v519 = vld [vmem:[%s3 + $0x18] sm:$0xff]
  %v520 = vld [vmem:[%s3 + $0x20] sm:$0xff]
  %v521 = vld [vmem:[%s3 + $0x28] sm:$0xff]
  %v522 = vld [vmem:[%s3 + $0x30] sm:$0xff]
  %v523 = vld [vmem:[%s3 + $0x38] sm:$0xff]
  %v524 = vld [vmem:[%s3 + $0x40] sm:$0xff]
  %v525 = vld [vmem:[%s3 + $0x48] sm:$0xff]
  %v526 = vld [vmem:[%s3 + $0x50] sm:$0xff]
  %v527 = vld [vmem:[%s3 + $0x58] sm:$0xff]
  %v528 = vld [vmem:[%s3 + $0x60] sm:$0xff]
  %v529 = vld [vmem:[%s3 + $0x68] sm:$0xff]
  %v530 = vld [vmem:[%s3 + $0x70] sm:$0xff]
  %v531 = vld [vmem:[%s3 + $0x78] sm:$0xff]
  %v532 = vld [vmem:[%s3 + $0x80] sm:$0xff]
  %v533 = vld [vmem:[%s3 + $0x88] sm:$0xff]
  %v534 = vld [vmem:[%s3 + $0x90] sm:$0xff]
  %v535 = vld [vmem:[%s3 + $0x98] sm:$0xff]
  %v536 = vld [vmem:[%s3 + $0xa0] sm:$0xff]
  %v537 = vld [vmem:[%s3 + $0xa8] sm:$0xff]
  %v538 = vld [vmem:[%s3 + $0xb0] sm:$0xff]
  %v539 = vld [vmem:[%s3 + $0xb8] sm:$0xff]
  %v540 = vld [vmem:[%s3 + $0xc0] sm:$0xff]
  %v541 = vld [vmem:[%s3 + $0xc8] sm:$0xff]
  %v542 = vld [vmem:[%s3 + $0xd0] sm:$0xff]
  %v543 = vld [vmem:[%s3 + $0xd8] sm:$0xff]
  %v544 = vld [vmem:[%s3 + $0xe0] sm:$0xff]
  %v545 = vld [vmem:[%s3 + $0xe8] sm:$0xff]
  %v546 = vld [vmem:[%s3 + $0xf0] sm:$0xff]
  %v547 = vld [vmem:[%s3 + $0xf8] sm:$0xff]
  %v548 = vld [vmem:[%s3 + $0x100] sm:$0xff]
  %v549 = vld [vmem:[%s3 + $0x108] sm:$0xff]
  %v550 = vld [vmem:[%s3 + $0x110] sm:$0xff]
  %v551 = vld [vmem:[%s3 + $0x118] sm:$0xff]
  %v552 = vld [vmem:[%s3 + $0x120] sm:$0xff]
  %v553 = vld [vmem:[%s3 + $0x128] sm:$0xff]
  %v554 = vld [vmem:[%s3 + $0x130] sm:$0xff]
  %v555 = vld [vmem:[%s3 + $0x138] sm:$0xff]
  %v556 = vld [vmem:[%s3 + $0x140] sm:$0xff]
  %v557 = vld [vmem:[%s3 + $0x148] sm:$0xff]
  %v558 = vld [vmem:[%s3 + $0x150] sm:$0xff]
  %v559 = vld [vmem:[%s3 + $0x158] sm:$0xff]
  %v560 = vld [vmem:[%s3 + $0x160] sm:$0xff]
  %v561 = vld [vmem:[%s3 + $0x168] sm:$0xff]
  %v562 = vld [vmem:[%s3 + $0x170] sm:$0xff]
  %v563 = vld [vmem:[%s3 + $0x178] sm:$0xff]
  %v564 = vld [vmem:[%s3 + $0x180] sm:$0xff]
  %v565 = vld [vmem:[%s3 + $0x188] sm:$0xff]
  %v566 = vld [vmem:[%s3 + $0x190] sm:$0xff]
  %v567 = vld [vmem:[%s3 + $0x198] sm:$0xff]
  %v568 = vld [vmem:[%s3 + $0x1a0] sm:$0xff]
  %v569 = vld [vmem:[%s3 + $0x1a8] sm:$0xff]
  %v570 = vld [vmem:[%s3 + $0x1b0] sm:$0xff]
  %v571 = vld [vmem:[%s3 + $0x1b8] sm:$0xff]
  %v572 = vld [vmem:[%s3 + $0x1c0] sm:$0xff]
  %v573 = vld [vmem:[%s3 + $0x1c8] sm:$0xff]
  %v574 = vld [vmem:[%s3 + $0x1d0] sm:$0xff]
  %v575 = vld [vmem:[%s3 + $0x1d8] sm:$0xff]
  %v576 = vld [vmem:[%s3 + $0x1e0] sm:$0xff]
  %v577 = vld [vmem:[%s3 + $0x1e8] sm:$0xff]
  %v578 = vld [vmem:[%s3 + $0x1f0] sm:$0xff]
  %v579 = vld [vmem:[%s3 + $0x1f8] sm:$0xff]
  %v580 = vld [vmem:[%s3 + $0x200] sm:$0xff]
  %v581 = vld [vmem:[%s3 + $0x208] sm:$0xff]
  %v582 = vld [vmem:[%s3 + $0x210] sm:$0xff]
  %v583 = vld [vmem:[%s3 + $0x218] sm:$0xff]
  %v584 = vld [vmem:[%s3 + $0x220] sm:$0xff]
  %v585 = vld [vmem:[%s3 + $0x228] sm:$0xff]
  %v586 = vld [vmem:[%s3 + $0x230] sm:$0xff]
  %v587 = vld [vmem:[%s3 + $0x238] sm:$0xff]
  %v588 = vld [vmem:[%s3 + $0x240] sm:$0xff]
  %v589 = vld [vmem:[%s3 + $0x248] sm:$0xff]
  %v590 = vld [vmem:[%s3 + $0x250] sm:$0xff]
  %v591 = vld [vmem:[%s3 + $0x258] sm:$0xff]
  %v592 = vld [vmem:[%s3 + $0x260] sm:$0xff]
  %v593 = vld [vmem:[%s3 + $0x268] sm:$0xff]
  %v594 = vld [vmem:[%s3 + $0x270] sm:$0xff]
  %v595 = vld [vmem:[%s3 + $0x278] sm:$0xff]
  %v596 = vld [vmem:[%s3 + $0x280] sm:$0xff]
  %v597 = vld [vmem:[%s3 + $0x288] sm:$0xff]
  %v598 = vld [vmem:[%s3 + $0x290] sm:$0xff]
  %v599 = vld [vmem:[%s3 + $0x298] sm:$0xff]
  %v600 = vld [vmem:[%s3 + $0x2a0] sm:$0xff]
  %v601 = vld [vmem:[%s3 + $0x2a8] sm:$0xff]
  %v602 = vld [vmem:[%s3 + $0x2b0] sm:$0xff]
  %v603 = vld [vmem:[%s3 + $0x2b8] sm:$0xff]
  %v604 = vld [vmem:[%s3 + $0x2c0] sm:$0xff]
  %v605 = vld [vmem:[%s3 + $0x2c8] sm:$0xff]
  %v606 = vld [vmem:[%s3 + $0x2d0] sm:$0xff]
  %v607 = vld [vmem:[%s3 + $0x2d8] sm:$0xff]
  %v608 = vld [vmem:[%s3 + $0x2e0] sm:$0xff]
  %v609 = vld [vmem:[%s3 + $0x2e8] sm:$0xff]
  %v610 = vld [vmem:[%s3 + $0x2f0] sm:$0xff]
  %v611 = vld [vmem:[%s3 + $0x2f8] sm:$0xff]
  %v612 = vld [vmem:[%s3 + $0x300] sm:$0xff]
  %v613 = vld [vmem:[%s3 + $0x308] sm:$0xff]
  %v614 = vld [vmem:[%s3 + $0x310] sm:$0xff]
  %v615 = vld [vmem:[%s3 + $0x318] sm:$0xff]
  %v616 = vld [vmem:[%s3 + $0x320] sm:$0xff]
  %v617 = vld [vmem:[%s3 + $0x328] sm:$0xff]
  %v618 = vld [vmem:[%s3 + $0x330] sm:$0xff]
  %v619 = vld [vmem:[%s3 + $0x338] sm:$0xff]
  %v620 = vld [vmem:[%s3 + $0x340] sm:$0xff]
  %v621 = vld [vmem:[%s3 + $0x348] sm:$0xff]
  %v622 = vld [vmem:[%s3 + $0x350] sm:$0xff]
  %v623 = vld [vmem:[%s3 + $0x358] sm:$0xff]
  %v624 = vld [vmem:[%s3 + $0x360] sm:$0xff]
  %v625 = vld [vmem:[%s3 + $0x368] sm:$0xff]
  %v626 = vld [vmem:[%s3 + $0x370] sm:$0xff]
  %v627 = vld [vmem:[%s3 + $0x378] sm:$0xff]
  %v628 = vld [vmem:[%s3 + $0x380] sm:$0xff]
  %v629 = vld [vmem:[%s3 + $0x388] sm:$0xff]
  %v630 = vld [vmem:[%s3 + $0x390] sm:$0xff]
  %v631 = vld [vmem:[%s3 + $0x398] sm:$0xff]
  %v632 = vld [vmem:[%s3 + $0x3a0] sm:$0xff]
  %v633 = vld [vmem:[%s3 + $0x3a8] sm:$0xff]
  %v634 = vld [vmem:[%s3 + $0x3b0] sm:$0xff]
  %v635 = vld [vmem:[%s3 + $0x3b8] sm:$0xff]
  %v636 = vld [vmem:[%s3 + $0x3c0] sm:$0xff]
  %v637 = vld [vmem:[%s3 + $0x3c8] sm:$0xff]
  %v638 = vld [vmem:[%s3 + $0x3d0] sm:$0xff]
  %v639 = vld [vmem:[%s3 + $0x3d8] sm:$0xff]
  %v640 = vld [vmem:[%s3 + $0x3e0] sm:$0xff]
  %v641 = vld [vmem:[%s3 + $0x3e8] sm:$0xff]
  %v642 = vld [vmem:[%s3 + $0x3f0] sm:$0xff]
  %v643 = vld [vmem:[%s3 + $0x3f8] sm:$0xff]
  %v644 = vld [vmem:[%s4] sm:$0xf]
  %v646 = vlaneseq
  %v647 = vshrl.u32 %v646, 7
  %v648 = vsub.s32 0, %v647
  %v649 = vrot.slane %v644, %v648
  %v650 = vlaneseq
  %v651 = vshrl.u32 %v650, 7
  %v652 = vsub.s32 1, %v651
  %v653 = vrot.slane %v644, %v652
  %v654 = vlaneseq
  %v655 = vshrl.u32 %v654, 7
  %v656 = vsub.s32 2, %v655
  %v657 = vrot.slane %v644, %v656
  %v658 = vlaneseq
  %v659 = vshrl.u32 %v658, 7
  %v660 = vsub.s32 3, %v659
  %v661 = vrot.slane %v644, %v660
  %v794 = vunpack.c.l.b16 %v516
  %v795 = vunpack.c.h.b16 %v516
  %v796 = vunpack.c.l.b16 %v517
  %v797 = vunpack.c.h.b16 %v517
  %v798 = vunpack.c.l.b16 %v518
  %v799 = vunpack.c.h.b16 %v518
  %v800 = vunpack.c.l.b16 %v519
  %v801 = vunpack.c.h.b16 %v519
  %v802 = vunpack.c.l.b16 %v520
  %v803 = vunpack.c.h.b16 %v520
  %v804 = vunpack.c.l.b16 %v521
  %v805 = vunpack.c.h.b16 %v521
  %v806 = vunpack.c.l.b16 %v522
  %v807 = vunpack.c.h.b16 %v522
  %v808 = vunpack.c.l.b16 %v523
  %v809 = vunpack.c.h.b16 %v523
  %v810 = vunpack.c.l.b16 %v524
  %v811 = vunpack.c.h.b16 %v524
  %v812 = vunpack.c.l.b16 %v525
  %v813 = vunpack.c.h.b16 %v525
  %v814 = vunpack.c.l.b16 %v526
  %v815 = vunpack.c.h.b16 %v526
  %v816 = vunpack.c.l.b16 %v527
  %v817 = vunpack.c.h.b16 %v527
  %v818 = vunpack.c.l.b16 %v528
  %v819 = vunpack.c.h.b16 %v528
  %v820 = vunpack.c.l.b16 %v529
  %v821 = vunpack.c.h.b16 %v529
  %v822 = vunpack.c.l.b16 %v530
  %v823 = vunpack.c.h.b16 %v530
  %v824 = vunpack.c.l.b16 %v531
  %v825 = vunpack.c.h.b16 %v531
  %v826 = vunpack.c.l.b16 %v532
  %v827 = vunpack.c.h.b16 %v532
  %v828 = vunpack.c.l.b16 %v533
  %v829 = vunpack.c.h.b16 %v533
  %v830 = vunpack.c.l.b16 %v534
  %v831 = vunpack.c.h.b16 %v534
  %v832 = vunpack.c.l.b16 %v535
  %v833 = vunpack.c.h.b16 %v535
  %v834 = vunpack.c.l.b16 %v536
  %v835 = vunpack.c.h.b16 %v536
  %v836 = vunpack.c.l.b16 %v537
  %v837 = vunpack.c.h.b16 %v537
  %v838 = vunpack.c.l.b16 %v538
  %v839 = vunpack.c.h.b16 %v538
  %v840 = vunpack.c.l.b16 %v539
  %v841 = vunpack.c.h.b16 %v539
  %v842 = vunpack.c.l.b16 %v540
  %v843 = vunpack.c.h.b16 %v540
  %v844 = vunpack.c.l.b16 %v541
  %v845 = vunpack.c.h.b16 %v541
  %v846 = vunpack.c.l.b16 %v542
  %v847 = vunpack.c.h.b16 %v542
  %v848 = vunpack.c.l.b16 %v543
  %v849 = vunpack.c.h.b16 %v543
  %v850 = vunpack.c.l.b16 %v544
  %v851 = vunpack.c.h.b16 %v544
  %v852 = vunpack.c.l.b16 %v545
  %v853 = vunpack.c.h.b16 %v545
  %v854 = vunpack.c.l.b16 %v546
  %v855 = vunpack.c.h.b16 %v546
  %v856 = vunpack.c.l.b16 %v547
  %v857 = vunpack.c.h.b16 %v547
  %v858 = vunpack.c.l.b16 %v548
  %v859 = vunpack.c.h.b16 %v548
  %v860 = vunpack.c.l.b16 %v549
  %v861 = vunpack.c.h.b16 %v549
  %v862 = vunpack.c.l.b16 %v550
  %v863 = vunpack.c.h.b16 %v550
  %v864 = vunpack.c.l.b16 %v551
  %v865 = vunpack.c.h.b16 %v551
  %v866 = vunpack.c.l.b16 %v552
  %v867 = vunpack.c.h.b16 %v552
  %v868 = vunpack.c.l.b16 %v553
  %v869 = vunpack.c.h.b16 %v553
  %v870 = vunpack.c.l.b16 %v554
  %v871 = vunpack.c.h.b16 %v554
  %v872 = vunpack.c.l.b16 %v555
  %v873 = vunpack.c.h.b16 %v555
  %v874 = vunpack.c.l.b16 %v556
  %v875 = vunpack.c.h.b16 %v556
  %v876 = vunpack.c.l.b16 %v557
  %v877 = vunpack.c.h.b16 %v557
  %v878 = vunpack.c.l.b16 %v558
  %v879 = vunpack.c.h.b16 %v558
  %v880 = vunpack.c.l.b16 %v559
  %v881 = vunpack.c.h.b16 %v559
  %v882 = vunpack.c.l.b16 %v560
  %v883 = vunpack.c.h.b16 %v560
  %v884 = vunpack.c.l.b16 %v561
  %v885 = vunpack.c.h.b16 %v561
  %v886 = vunpack.c.l.b16 %v562
  %v887 = vunpack.c.h.b16 %v562
  %v888 = vunpack.c.l.b16 %v563
  %v889 = vunpack.c.h.b16 %v563
  %v890 = vunpack.c.l.b16 %v564
  %v891 = vunpack.c.h.b16 %v564
  %v892 = vunpack.c.l.b16 %v565
  %v893 = vunpack.c.h.b16 %v565
  %v894 = vunpack.c.l.b16 %v566
  %v895 = vunpack.c.h.b16 %v566
  %v896 = vunpack.c.l.b16 %v567
  %v897 = vunpack.c.h.b16 %v567
  %v898 = vunpack.c.l.b16 %v568
  %v899 = vunpack.c.h.b16 %v568
  %v900 = vunpack.c.l.b16 %v569
  %v901 = vunpack.c.h.b16 %v569
  %v902 = vunpack.c.l.b16 %v570
  %v903 = vunpack.c.h.b16 %v570
  %v904 = vunpack.c.l.b16 %v571
  %v905 = vunpack.c.h.b16 %v571
  %v906 = vunpack.c.l.b16 %v572
  %v907 = vunpack.c.h.b16 %v572
  %v908 = vunpack.c.l.b16 %v573
  %v909 = vunpack.c.h.b16 %v573
  %v910 = vunpack.c.l.b16 %v574
  %v911 = vunpack.c.h.b16 %v574
  %v912 = vunpack.c.l.b16 %v575
  %v913 = vunpack.c.h.b16 %v575
  %v914 = vunpack.c.l.b16 %v576
  %v915 = vunpack.c.h.b16 %v576
  %v916 = vunpack.c.l.b16 %v577
  %v917 = vunpack.c.h.b16 %v577
  %v918 = vunpack.c.l.b16 %v578
  %v919 = vunpack.c.h.b16 %v578
  %v920 = vunpack.c.l.b16 %v579
  %v921 = vunpack.c.h.b16 %v579
  %v922 = vunpack.c.l.b16 %v580
  %v923 = vunpack.c.h.b16 %v580
  %v924 = vunpack.c.l.b16 %v581
  %v925 = vunpack.c.h.b16 %v581
  %v926 = vunpack.c.l.b16 %v582
  %v927 = vunpack.c.h.b16 %v582
  %v928 = vunpack.c.l.b16 %v583
  %v929 = vunpack.c.h.b16 %v583
  %v930 = vunpack.c.l.b16 %v584
  %v931 = vunpack.c.h.b16 %v584
  %v932 = vunpack.c.l.b16 %v585
  %v933 = vunpack.c.h.b16 %v585
  %v934 = vunpack.c.l.b16 %v586
  %v935 = vunpack.c.h.b16 %v586
  %v936 = vunpack.c.l.b16 %v587
  %v937 = vunpack.c.h.b16 %v587
  %v938 = vunpack.c.l.b16 %v588
  %v939 = vunpack.c.h.b16 %v588
  %v940 = vunpack.c.l.b16 %v589
  %v941 = vunpack.c.h.b16 %v589
  %v942 = vunpack.c.l.b16 %v590
  %v943 = vunpack.c.h.b16 %v590
  %v944 = vunpack.c.l.b16 %v591
  %v945 = vunpack.c.h.b16 %v591
  %v946 = vunpack.c.l.b16 %v592
  %v947 = vunpack.c.h.b16 %v592
  %v948 = vunpack.c.l.b16 %v593
  %v949 = vunpack.c.h.b16 %v593
  %v950 = vunpack.c.l.b16 %v594
  %v951 = vunpack.c.h.b16 %v594
  %v952 = vunpack.c.l.b16 %v595
  %v953 = vunpack.c.h.b16 %v595
  %v954 = vunpack.c.l.b16 %v596
  %v955 = vunpack.c.h.b16 %v596
  %v956 = vunpack.c.l.b16 %v597
  %v957 = vunpack.c.h.b16 %v597
  %v958 = vunpack.c.l.b16 %v598
  %v959 = vunpack.c.h.b16 %v598
  %v960 = vunpack.c.l.b16 %v599
  %v961 = vunpack.c.h.b16 %v599
  %v962 = vunpack.c.l.b16 %v600
  %v963 = vunpack.c.h.b16 %v600
  %v964 = vunpack.c.l.b16 %v601
  %v965 = vunpack.c.h.b16 %v601
  %v966 = vunpack.c.l.b16 %v602
  %v967 = vunpack.c.h.b16 %v602
  %v968 = vunpack.c.l.b16 %v603
  %v969 = vunpack.c.h.b16 %v603
  %v970 = vunpack.c.l.b16 %v604
  %v971 = vunpack.c.h.b16 %v604
  %v972 = vunpack.c.l.b16 %v605
  %v973 = vunpack.c.h.b16 %v605
  %v974 = vunpack.c.l.b16 %v606
  %v975 = vunpack.c.h.b16 %v606
  %v976 = vunpack.c.l.b16 %v607
  %v977 = vunpack.c.h.b16 %v607
  %v978 = vunpack.c.l.b16 %v608
  %v979 = vunpack.c.h.b16 %v608
  %v980 = vunpack.c.l.b16 %v609
  %v981 = vunpack.c.h.b16 %v609
  %v982 = vunpack.c.l.b16 %v610
  %v983 = vunpack.c.h.b16 %v610
  %v984 = vunpack.c.l.b16 %v611
  %v985 = vunpack.c.h.b16 %v611
  %v986 = vunpack.c.l.b16 %v612
  %v987 = vunpack.c.h.b16 %v612
  %v988 = vunpack.c.l.b16 %v613
  %v989 = vunpack.c.h.b16 %v613
  %v990 = vunpack.c.l.b16 %v614
  %v991 = vunpack.c.h.b16 %v614
  %v992 = vunpack.c.l.b16 %v615
  %v993 = vunpack.c.h.b16 %v615
  %v994 = vunpack.c.l.b16 %v616
  %v995 = vunpack.c.h.b16 %v616
  %v996 = vunpack.c.l.b16 %v617
  %v997 = vunpack.c.h.b16 %v617
  %v998 = vunpack.c.l.b16 %v618
  %v999 = vunpack.c.h.b16 %v618
  %v1000 = vunpack.c.l.b16 %v619
  %v1001 = vunpack.c.h.b16 %v619
  %v1002 = vunpack.c.l.b16 %v620
  %v1003 = vunpack.c.h.b16 %v620
  %v1004 = vunpack.c.l.b16 %v621
  %v1005 = vunpack.c.h.b16 %v621
  %v1006 = vunpack.c.l.b16 %v622
  %v1007 = vunpack.c.h.b16 %v622
  %v1008 = vunpack.c.l.b16 %v623
  %v1009 = vunpack.c.h.b16 %v623
  %v1010 = vunpack.c.l.b16 %v624
  %v1011 = vunpack.c.h.b16 %v624
  %v1012 = vunpack.c.l.b16 %v625
  %v1013 = vunpack.c.h.b16 %v625
  %v1014 = vunpack.c.l.b16 %v626
  %v1015 = vunpack.c.h.b16 %v626
  %v1016 = vunpack.c.l.b16 %v627
  %v1017 = vunpack.c.h.b16 %v627
  %v1018 = vunpack.c.l.b16 %v628
  %v1019 = vunpack.c.h.b16 %v628
  %v1020 = vunpack.c.l.b16 %v629
  %v1021 = vunpack.c.h.b16 %v629
  %v1022 = vunpack.c.l.b16 %v630
  %v1023 = vunpack.c.h.b16 %v630
  %v1024 = vunpack.c.l.b16 %v631
  %v1025 = vunpack.c.h.b16 %v631
  %v1026 = vunpack.c.l.b16 %v632
  %v1027 = vunpack.c.h.b16 %v632
  %v1028 = vunpack.c.l.b16 %v633
  %v1029 = vunpack.c.h.b16 %v633
  %v1030 = vunpack.c.l.b16 %v634
  %v1031 = vunpack.c.h.b16 %v634
  %v1032 = vunpack.c.l.b16 %v635
  %v1033 = vunpack.c.h.b16 %v635
  %v1034 = vunpack.c.l.b16 %v636
  %v1035 = vunpack.c.h.b16 %v636
  %v1036 = vunpack.c.l.b16 %v637
  %v1037 = vunpack.c.h.b16 %v637
  %v1038 = vunpack.c.l.b16 %v638
  %v1039 = vunpack.c.h.b16 %v638
  %v1040 = vunpack.c.l.b16 %v639
  %v1041 = vunpack.c.h.b16 %v639
  %v1042 = vunpack.c.l.b16 %v640
  %v1043 = vunpack.c.h.b16 %v640
  %v1044 = vunpack.c.l.b16 %v641
  %v1045 = vunpack.c.h.b16 %v641
  %v1046 = vunpack.c.l.b16 %v642
  %v1047 = vunpack.c.h.b16 %v642
  %v1048 = vunpack.c.l.b16 %v643
  %v1049 = vunpack.c.h.b16 %v643
  %v1050 = vpack.c.b16 %v798, %v794
  %v1051 = vpack.c.b16 %v799, %v795
  %v1052 = vpack.c.b16 %v800, %v796
  %v1053 = vpack.c.b16 %v801, %v797
  %v1054 = vpack.c.b16 %v806, %v802
  %v1055 = vpack.c.b16 %v807, %v803
  %v1056 = vpack.c.b16 %v808, %v804
  %v1057 = vpack.c.b16 %v809, %v805
  %v1058 = vpack.c.b16 %v814, %v810
  %v1059 = vpack.c.b16 %v815, %v811
  %v1060 = vpack.c.b16 %v816, %v812
  %v1061 = vpack.c.b16 %v817, %v813
  %v1062 = vpack.c.b16 %v822, %v818
  %v1063 = vpack.c.b16 %v823, %v819
  %v1064 = vpack.c.b16 %v824, %v820
  %v1065 = vpack.c.b16 %v825, %v821
  %v1066 = vpack.c.b16 %v830, %v826
  %v1067 = vpack.c.b16 %v831, %v827
  %v1068 = vpack.c.b16 %v832, %v828
  %v1069 = vpack.c.b16 %v833, %v829
  %v1070 = vpack.c.b16 %v838, %v834
  %v1071 = vpack.c.b16 %v839, %v835
  %v1072 = vpack.c.b16 %v840, %v836
  %v1073 = vpack.c.b16 %v841, %v837
  %v1074 = vpack.c.b16 %v846, %v842
  %v1075 = vpack.c.b16 %v847, %v843
  %v1076 = vpack.c.b16 %v848, %v844
  %v1077 = vpack.c.b16 %v849, %v845
  %v1078 = vpack.c.b16 %v854, %v850
  %v1079 = vpack.c.b16 %v855, %v851
  %v1080 = vpack.c.b16 %v856, %v852
  %v1081 = vpack.c.b16 %v857, %v853
  %v1082 = vpack.c.b16 %v862, %v858
  %v1083 = vpack.c.b16 %v863, %v859
  %v1084 = vpack.c.b16 %v864, %v860
  %v1085 = vpack.c.b16 %v865, %v861
  %v1086 = vpack.c.b16 %v870, %v866
  %v1087 = vpack.c.b16 %v871, %v867
  %v1088 = vpack.c.b16 %v872, %v868
  %v1089 = vpack.c.b16 %v873, %v869
  %v1090 = vpack.c.b16 %v878, %v874
  %v1091 = vpack.c.b16 %v879, %v875
  %v1092 = vpack.c.b16 %v880, %v876
  %v1093 = vpack.c.b16 %v881, %v877
  %v1094 = vpack.c.b16 %v886, %v882
  %v1095 = vpack.c.b16 %v887, %v883
  %v1096 = vpack.c.b16 %v888, %v884
  %v1097 = vpack.c.b16 %v889, %v885
  %v1098 = vpack.c.b16 %v894, %v890
  %v1099 = vpack.c.b16 %v895, %v891
  %v1100 = vpack.c.b16 %v896, %v892
  %v1101 = vpack.c.b16 %v897, %v893
  %v1102 = vpack.c.b16 %v902, %v898
  %v1103 = vpack.c.b16 %v903, %v899
  %v1104 = vpack.c.b16 %v904, %v900
  %v1105 = vpack.c.b16 %v905, %v901
  %v1106 = vpack.c.b16 %v910, %v906
  %v1107 = vpack.c.b16 %v911, %v907
  %v1108 = vpack.c.b16 %v912, %v908
  %v1109 = vpack.c.b16 %v913, %v909
  %v1110 = vpack.c.b16 %v918, %v914
  %v1111 = vpack.c.b16 %v919, %v915
  %v1112 = vpack.c.b16 %v920, %v916
  %v1113 = vpack.c.b16 %v921, %v917
  %v1114 = vpack.c.b16 %v926, %v922
  %v1115 = vpack.c.b16 %v927, %v923
  %v1116 = vpack.c.b16 %v928, %v924
  %v1117 = vpack.c.b16 %v929, %v925
  %v1118 = vpack.c.b16 %v934, %v930
  %v1119 = vpack.c.b16 %v935, %v931
  %v1120 = vpack.c.b16 %v936, %v932
  %v1121 = vpack.c.b16 %v937, %v933
  %v1122 = vpack.c.b16 %v942, %v938
  %v1123 = vpack.c.b16 %v943, %v939
  %v1124 = vpack.c.b16 %v944, %v940
  %v1125 = vpack.c.b16 %v945, %v941
  %v1126 = vpack.c.b16 %v950, %v946
  %v1127 = vpack.c.b16 %v951, %v947
  %v1128 = vpack.c.b16 %v952, %v948
  %v1129 = vpack.c.b16 %v953, %v949
  %v1130 = vpack.c.b16 %v958, %v954
  %v1131 = vpack.c.b16 %v959, %v955
  %v1132 = vpack.c.b16 %v960, %v956
  %v1133 = vpack.c.b16 %v961, %v957
  %v1134 = vpack.c.b16 %v966, %v962
  %v1135 = vpack.c.b16 %v967, %v963
  %v1136 = vpack.c.b16 %v968, %v964
  %v1137 = vpack.c.b16 %v969, %v965
  %v1138 = vpack.c.b16 %v974, %v970
  %v1139 = vpack.c.b16 %v975, %v971
  %v1140 = vpack.c.b16 %v976, %v972
  %v1141 = vpack.c.b16 %v977, %v973
  %v1142 = vpack.c.b16 %v982, %v978
  %v1143 = vpack.c.b16 %v983, %v979
  %v1144 = vpack.c.b16 %v984, %v980
  %v1145 = vpack.c.b16 %v985, %v981
  %v1146 = vpack.c.b16 %v990, %v986
  %v1147 = vpack.c.b16 %v991, %v987
  %v1148 = vpack.c.b16 %v992, %v988
  %v1149 = vpack.c.b16 %v993, %v989
  %v1150 = vpack.c.b16 %v998, %v994
  %v1151 = vpack.c.b16 %v999, %v995
  %v1152 = vpack.c.b16 %v1000, %v996
  %v1153 = vpack.c.b16 %v1001, %v997
  %v1154 = vpack.c.b16 %v1006, %v1002
  %v1155 = vpack.c.b16 %v1007, %v1003
  %v1156 = vpack.c.b16 %v1008, %v1004
  %v1157 = vpack.c.b16 %v1009, %v1005
  %v1158 = vpack.c.b16 %v1014, %v1010
  %v1159 = vpack.c.b16 %v1015, %v1011
  %v1160 = vpack.c.b16 %v1016, %v1012
  %v1161 = vpack.c.b16 %v1017, %v1013
  %v1162 = vpack.c.b16 %v1022, %v1018
  %v1163 = vpack.c.b16 %v1023, %v1019
  %v1164 = vpack.c.b16 %v1024, %v1020
  %v1165 = vpack.c.b16 %v1025, %v1021
  %v1166 = vpack.c.b16 %v1030, %v1026
  %v1167 = vpack.c.b16 %v1031, %v1027
  %v1168 = vpack.c.b16 %v1032, %v1028
  %v1169 = vpack.c.b16 %v1033, %v1029
  %v1170 = vpack.c.b16 %v1038, %v1034
  %v1171 = vpack.c.b16 %v1039, %v1035
  %v1172 = vpack.c.b16 %v1040, %v1036
  %v1173 = vpack.c.b16 %v1041, %v1037
  %v1174 = vpack.c.b16 %v1046, %v1042
  %v1175 = vpack.c.b16 %v1047, %v1043
  %v1176 = vpack.c.b16 %v1048, %v1044
  %v1177 = vpack.c.b16 %v1049, %v1045
  %1306 = vmatprep.subr.bf16.mxu0 %v1079
  %1307 = vmatpush1.bf16.msra.mxu0 %v1078
  %1308 = vmatprep.subr.bf16.mxu0 %v1075
  %1309 = vmatpush1.bf16.msra.mxu0 %v1074
  %1310 = vmatprep.subr.bf16.mxu0 %v1071
  %1311 = vmatpush1.bf16.msra.mxu0 %v1070
  %1312 = vmatprep.subr.bf16.mxu0 %v1067
  %1313 = vmatpush1.bf16.msra.mxu0 %v1066
  %1314 = vmatprep.subr.bf16.mxu0 %v1063
  %1315 = vmatpush1.bf16.msra.mxu0 %v1062
  %1316 = vmatprep.subr.bf16.mxu0 %v1059
  %1317 = vmatpush1.bf16.msra.mxu0 %v1058
  %1318 = vmatprep.subr.bf16.mxu0 %v1055
  %1319 = vmatpush1.bf16.msra.mxu0 %v1054
  %1320 = vmatprep.subr.bf16.mxu0 %v1051
  %1321 = vmatpush1.bf16.msra.mxu0 %v1050
  %1322 = vmatprep.subr.bf16.mxu0 %v1111
  %1323 = vmatpush2.bf16.msra.mxu0 %v1110
  %1324 = vmatprep.subr.bf16.mxu0 %v1107
  %1325 = vmatpush2.bf16.msra.mxu0 %v1106
  %1326 = vmatprep.subr.bf16.mxu0 %v1103
  %1327 = vmatpush2.bf16.msra.mxu0 %v1102
  %1328 = vmatprep.subr.bf16.mxu0 %v1099
  %1329 = vmatpush2.bf16.msra.mxu0 %v1098
  %1330 = vmatprep.subr.bf16.mxu0 %v1095
  %1331 = vmatpush2.bf16.msra.mxu0 %v1094
  %1332 = vmatprep.subr.bf16.mxu0 %v1091
  %1333 = vmatpush2.bf16.msra.mxu0 %v1090
  %1334 = vmatprep.subr.bf16.mxu0 %v1087
  %1335 = vmatpush2.bf16.msra.mxu0 %v1086
  %1336 = vmatprep.subr.bf16.mxu0 %v1083
  %1337 = vmatpush2.bf16.msra.mxu0 %v1082
  %1338 = vmatprep.mubr.bf16.mxu0 %v485
  %1339 = vmatmul.mubr.bf16.gmra.mxu0 %v484
  %v1340 = vpop.f32.mrf.mxu0
  %v1341 = vadd.f32 %v649, %v1340
  %v1342 = vpop.f32.mrf.mxu0
  %v1343 = vadd.f32 %v653, %v1342
  %v1344 = vpop.f32.mrf.mxu0
  %v1345 = vadd.f32 %v649, %v1344
  %v1346 = vpop.f32.mrf.mxu0
  %v1347 = vadd.f32 %v653, %v1346
  %1348 = vmatprep.mubr.bf16.mxu0 %v489
  %1349 = vmatmul.mubr.bf16.gmra.mxu0 %v488
  %v1350 = vpop.f32.mrf.mxu0
  %v1351 = vadd.f32 %v649, %v1350
  %v1352 = vpop.f32.mrf.mxu0
  %v1353 = vadd.f32 %v653, %v1352
  %v1354 = vpop.f32.mrf.mxu0
  %v1355 = vadd.f32 %v649, %v1354
  %v1356 = vpop.f32.mrf.mxu0
  %v1357 = vadd.f32 %v653, %v1356
  %1358 = vmatprep.mubr.bf16.mxu0 %v493
  %1359 = vmatmul.mubr.bf16.gmra.mxu0 %v492
  %v1360 = vpop.f32.mrf.mxu0
  %v1361 = vadd.f32 %v649, %v1360
  %v1362 = vpop.f32.mrf.mxu0
  %v1363 = vadd.f32 %v653, %v1362
  %v1364 = vpop.f32.mrf.mxu0
  %v1365 = vadd.f32 %v649, %v1364
  %v1366 = vpop.f32.mrf.mxu0
  %v1367 = vadd.f32 %v653, %v1366
  %1368 = vmatprep.mubr.bf16.mxu0 %v497
  %1369 = vmatmul.mubr.bf16.gmra.mxu0 %v496
  %v1370 = vpop.f32.mrf.mxu0
  %v1371 = vadd.f32 %v649, %v1370
  %v1372 = vpop.f32.mrf.mxu0
  %v1373 = vadd.f32 %v653, %v1372
  %v1374 = vpop.f32.mrf.mxu0
  %v1375 = vadd.f32 %v649, %v1374
  %v1376 = vpop.f32.mrf.mxu0
  %v1377 = vadd.f32 %v653, %v1376
  %1378 = vmatprep.mubr.bf16.mxu0 %v501
  %1379 = vmatmul.mubr.bf16.gmra.mxu0 %v500
  %v1380 = vpop.f32.mrf.mxu0
  %v1381 = vadd.f32 %v649, %v1380
  %v1382 = vpop.f32.mrf.mxu0
  %v1383 = vadd.f32 %v653, %v1382
  %v1384 = vpop.f32.mrf.mxu0
  %v1385 = vadd.f32 %v649, %v1384
  %v1386 = vpop.f32.mrf.mxu0
  %v1387 = vadd.f32 %v653, %v1386
  %1388 = vmatprep.mubr.bf16.mxu0 %v505
  %1389 = vmatmul.mubr.bf16.gmra.mxu0 %v504
  %v1390 = vpop.f32.mrf.mxu0
  %v1391 = vadd.f32 %v649, %v1390
  %v1392 = vpop.f32.mrf.mxu0
  %v1393 = vadd.f32 %v653, %v1392
  %v1394 = vpop.f32.mrf.mxu0
  %v1395 = vadd.f32 %v649, %v1394
  %v1396 = vpop.f32.mrf.mxu0
  %v1397 = vadd.f32 %v653, %v1396
  %1398 = vmatprep.mubr.bf16.mxu0 %v509
  %1399 = vmatmul.mubr.bf16.gmra.mxu0 %v508
  %v1400 = vpop.f32.mrf.mxu0
  %v1401 = vadd.f32 %v649, %v1400
  %v1402 = vpop.f32.mrf.mxu0
  %v1403 = vadd.f32 %v653, %v1402
  %v1404 = vpop.f32.mrf.mxu0
  %v1405 = vadd.f32 %v649, %v1404
  %v1406 = vpop.f32.mrf.mxu0
  %v1407 = vadd.f32 %v653, %v1406
  %1408 = vmatprep.mubr.bf16.mxu0 %v513
  %1409 = vmatmul.mubr.bf16.gmra.mxu0 %v512
  %v1410 = vpop.f32.mrf.mxu0
  %v1411 = vadd.f32 %v649, %v1410
  %v1412 = vpop.f32.mrf.mxu0
  %v1413 = vadd.f32 %v653, %v1412
  %v1414 = vpop.f32.mrf.mxu0
  %v1415 = vadd.f32 %v649, %v1414
  %v1416 = vpop.f32.mrf.mxu0
  %v1417 = vadd.f32 %v653, %v1416
  %1418 = vdwg.mxu0
  %1419 = vmatprep.subr.bf16.mxu0 %v1143
  %1420 = vmatpush1.bf16.msra.mxu0 %v1142
  %1421 = vmatprep.subr.bf16.mxu0 %v1139
  %1422 = vmatpush1.bf16.msra.mxu0 %v1138
  %1423 = vmatprep.subr.bf16.mxu0 %v1135
  %1424 = vmatpush1.bf16.msra.mxu0 %v1134
  %1425 = vmatprep.subr.bf16.mxu0 %v1131
  %1426 = vmatpush1.bf16.msra.mxu0 %v1130
  %1427 = vmatprep.subr.bf16.mxu0 %v1127
  %1428 = vmatpush1.bf16.msra.mxu0 %v1126
  %1429 = vmatprep.subr.bf16.mxu0 %v1123
  %1430 = vmatpush1.bf16.msra.mxu0 %v1122
  %1431 = vmatprep.subr.bf16.mxu0 %v1119
  %1432 = vmatpush1.bf16.msra.mxu0 %v1118
  %1433 = vmatprep.subr.bf16.mxu0 %v1115
  %1434 = vmatpush1.bf16.msra.mxu0 %v1114
  %1435 = vmatprep.subr.bf16.mxu0 %v1175
  %1436 = vmatpush2.bf16.msra.mxu0 %v1174
  %1437 = vmatprep.subr.bf16.mxu0 %v1171
  %1438 = vmatpush2.bf16.msra.mxu0 %v1170
  %1439 = vmatprep.subr.bf16.mxu0 %v1167
  %1440 = vmatpush2.bf16.msra.mxu0 %v1166
  %1441 = vmatprep.subr.bf16.mxu0 %v1163
  %1442 = vmatpush2.bf16.msra.mxu0 %v1162
  %1443 = vmatprep.subr.bf16.mxu0 %v1159
  %1444 = vmatpush2.bf16.msra.mxu0 %v1158
  %1445 = vmatprep.subr.bf16.mxu0 %v1155
  %1446 = vmatpush2.bf16.msra.mxu0 %v1154
  %1447 = vmatprep.subr.bf16.mxu0 %v1151
  %1448 = vmatpush2.bf16.msra.mxu0 %v1150
  %1449 = vmatprep.subr.bf16.mxu0 %v1147
  %1450 = vmatpush2.bf16.msra.mxu0 %v1146
  %1451 = vmatprep.mubr.bf16.mxu0 %v487
  %1452 = vmatmul.mubr.bf16.gmra.mxu0 %v486
  %v1453 = vpop.f32.mrf.mxu0
  %v1454 = vadd.f32 %v1341, %v1453
  %v1455 = vpop.f32.mrf.mxu0
  %v1456 = vadd.f32 %v1343, %v1455
  %v1457 = vpop.f32.mrf.mxu0
  %v1458 = vadd.f32 %v1345, %v1457
  %v1459 = vpop.f32.mrf.mxu0
  %v1460 = vadd.f32 %v1347, %v1459
  %1461 = vmatprep.mubr.bf16.mxu0 %v491
  %1462 = vmatmul.mubr.bf16.gmra.mxu0 %v490
  %v1463 = vpop.f32.mrf.mxu0
  %v1464 = vadd.f32 %v1351, %v1463
  %v1465 = vpop.f32.mrf.mxu0
  %v1466 = vadd.f32 %v1353, %v1465
  %v1467 = vpop.f32.mrf.mxu0
  %v1468 = vadd.f32 %v1355, %v1467
  %v1469 = vpop.f32.mrf.mxu0
  %v1470 = vadd.f32 %v1357, %v1469
  %1471 = vmatprep.mubr.bf16.mxu0 %v495
  %1472 = vmatmul.mubr.bf16.gmra.mxu0 %v494
  %v1473 = vpop.f32.mrf.mxu0
  %v1474 = vadd.f32 %v1361, %v1473
  %v1475 = vpop.f32.mrf.mxu0
  %v1476 = vadd.f32 %v1363, %v1475
  %v1477 = vpop.f32.mrf.mxu0
  %v1478 = vadd.f32 %v1365, %v1477
  %v1479 = vpop.f32.mrf.mxu0
  %v1480 = vadd.f32 %v1367, %v1479
  %1481 = vmatprep.mubr.bf16.mxu0 %v499
  %1482 = vmatmul.mubr.bf16.gmra.mxu0 %v498
  %v1483 = vpop.f32.mrf.mxu0
  %v1484 = vadd.f32 %v1371, %v1483
  %v1485 = vpop.f32.mrf.mxu0
  %v1486 = vadd.f32 %v1373, %v1485
  %v1487 = vpop.f32.mrf.mxu0
  %v1488 = vadd.f32 %v1375, %v1487
  %v1489 = vpop.f32.mrf.mxu0
  %v1490 = vadd.f32 %v1377, %v1489
  %1491 = vmatprep.mubr.bf16.mxu0 %v503
  %1492 = vmatmul.mubr.bf16.gmra.mxu0 %v502
  %v1493 = vpop.f32.mrf.mxu0
  %v1494 = vadd.f32 %v1381, %v1493
  %v1495 = vpop.f32.mrf.mxu0
  %v1496 = vadd.f32 %v1383, %v1495
  %v1497 = vpop.f32.mrf.mxu0
  %v1498 = vadd.f32 %v1385, %v1497
  %v1499 = vpop.f32.mrf.mxu0
  %v1500 = vadd.f32 %v1387, %v1499
  %1501 = vmatprep.mubr.bf16.mxu0 %v507
  %1502 = vmatmul.mubr.bf16.gmra.mxu0 %v506
  %v1503 = vpop.f32.mrf.mxu0
  %v1504 = vadd.f32 %v1391, %v1503
  %v1505 = vpop.f32.mrf.mxu0
  %v1506 = vadd.f32 %v1393, %v1505
  %v1507 = vpop.f32.mrf.mxu0
  %v1508 = vadd.f32 %v1395, %v1507
  %v1509 = vpop.f32.mrf.mxu0
  %v1510 = vadd.f32 %v1397, %v1509
  %1511 = vmatprep.mubr.bf16.mxu0 %v511
  %1512 = vmatmul.mubr.bf16.gmra.mxu0 %v510
  %v1513 = vpop.f32.mrf.mxu0
  %v1514 = vadd.f32 %v1401, %v1513
  %v1515 = vpop.f32.mrf.mxu0
  %v1516 = vadd.f32 %v1403, %v1515
  %v1517 = vpop.f32.mrf.mxu0
  %v1518 = vadd.f32 %v1405, %v1517
  %v1519 = vpop.f32.mrf.mxu0
  %v1520 = vadd.f32 %v1407, %v1519
  %1521 = vmatprep.mubr.bf16.mxu0 %v515
  %1522 = vmatmul.mubr.bf16.gmra.mxu0 %v514
  %v1523 = vpop.f32.mrf.mxu0
  %v1524 = vadd.f32 %v1411, %v1523
  %v1525 = vpop.f32.mrf.mxu0
  %v1526 = vadd.f32 %v1413, %v1525
  %v1527 = vpop.f32.mrf.mxu0
  %v1528 = vadd.f32 %v1415, %v1527
  %v1529 = vpop.f32.mrf.mxu0
  %v1530 = vadd.f32 %v1417, %v1529
  %1531 = vdwg.mxu0
  %1532 = vmatprep.subr.bf16.mxu0 %v1081
  %1533 = vmatpush1.bf16.msra.mxu0 %v1080
  %1534 = vmatprep.subr.bf16.mxu0 %v1077
  %1535 = vmatpush1.bf16.msra.mxu0 %v1076
  %1536 = vmatprep.subr.bf16.mxu0 %v1073
  %1537 = vmatpush1.bf16.msra.mxu0 %v1072
  %1538 = vmatprep.subr.bf16.mxu0 %v1069
  %1539 = vmatpush1.bf16.msra.mxu0 %v1068
  %1540 = vmatprep.subr.bf16.mxu0 %v1065
  %1541 = vmatpush1.bf16.msra.mxu0 %v1064
  %1542 = vmatprep.subr.bf16.mxu0 %v1061
  %1543 = vmatpush1.bf16.msra.mxu0 %v1060
  %1544 = vmatprep.subr.bf16.mxu0 %v1057
  %1545 = vmatpush1.bf16.msra.mxu0 %v1056
  %1546 = vmatprep.subr.bf16.mxu0 %v1053
  %1547 = vmatpush1.bf16.msra.mxu0 %v1052
  %1548 = vmatprep.subr.bf16.mxu0 %v1113
  %1549 = vmatpush2.bf16.msra.mxu0 %v1112
  %1550 = vmatprep.subr.bf16.mxu0 %v1109
  %1551 = vmatpush2.bf16.msra.mxu0 %v1108
  %1552 = vmatprep.subr.bf16.mxu0 %v1105
  %1553 = vmatpush2.bf16.msra.mxu0 %v1104
  %1554 = vmatprep.subr.bf16.mxu0 %v1101
  %1555 = vmatpush2.bf16.msra.mxu0 %v1100
  %1556 = vmatprep.subr.bf16.mxu0 %v1097
  %1557 = vmatpush2.bf16.msra.mxu0 %v1096
  %1558 = vmatprep.subr.bf16.mxu0 %v1093
  %1559 = vmatpush2.bf16.msra.mxu0 %v1092
  %1560 = vmatprep.subr.bf16.mxu0 %v1089
  %1561 = vmatpush2.bf16.msra.mxu0 %v1088
  %1562 = vmatprep.subr.bf16.mxu0 %v1085
  %1563 = vmatpush2.bf16.msra.mxu0 %v1084
  %1564 = vmatprep.mubr.bf16.mxu0 %v485
  %1565 = vmatmul.mubr.bf16.gmra.mxu0 %v484
  %v1566 = vpop.f32.mrf.mxu0
  %v1567 = vadd.f32 %v657, %v1566
  %v1568 = vpop.f32.mrf.mxu0
  %v1569 = vadd.f32 %v661, %v1568
  %v1570 = vpop.f32.mrf.mxu0
  %v1571 = vadd.f32 %v657, %v1570
  %v1572 = vpop.f32.mrf.mxu0
  %v1573 = vadd.f32 %v661, %v1572
  %1574 = vmatprep.mubr.bf16.mxu0 %v489
  %1575 = vmatmul.mubr.bf16.gmra.mxu0 %v488
  %v1576 = vpop.f32.mrf.mxu0
  %v1577 = vadd.f32 %v657, %v1576
  %v1578 = vpop.f32.mrf.mxu0
  %v1579 = vadd.f32 %v661, %v1578
  %v1580 = vpop.f32.mrf.mxu0
  %v1581 = vadd.f32 %v657, %v1580
  %v1582 = vpop.f32.mrf.mxu0
  %v1583 = vadd.f32 %v661, %v1582
  %1584 = vmatprep.mubr.bf16.mxu0 %v493
  %1585 = vmatmul.mubr.bf16.gmra.mxu0 %v492
  %v1586 = vpop.f32.mrf.mxu0
  %v1587 = vadd.f32 %v657, %v1586
  %v1588 = vpop.f32.mrf.mxu0
  %v1589 = vadd.f32 %v661, %v1588
  %v1590 = vpop.f32.mrf.mxu0
  %v1591 = vadd.f32 %v657, %v1590
  %v1592 = vpop.f32.mrf.mxu0
  %v1593 = vadd.f32 %v661, %v1592
  %1594 = vmatprep.mubr.bf16.mxu0 %v497
  %1595 = vmatmul.mubr.bf16.gmra.mxu0 %v496
  %v1596 = vpop.f32.mrf.mxu0
  %v1597 = vadd.f32 %v657, %v1596
  %v1598 = vpop.f32.mrf.mxu0
  %v1599 = vadd.f32 %v661, %v1598
  %v1600 = vpop.f32.mrf.mxu0
  %v1601 = vadd.f32 %v657, %v1600
  %v1602 = vpop.f32.mrf.mxu0
  %v1603 = vadd.f32 %v661, %v1602
  %1604 = vmatprep.mubr.bf16.mxu0 %v501
  %1605 = vmatmul.mubr.bf16.gmra.mxu0 %v500
  %v1606 = vpop.f32.mrf.mxu0
  %v1607 = vadd.f32 %v657, %v1606
  %v1608 = vpop.f32.mrf.mxu0
  %v1609 = vadd.f32 %v661, %v1608
  %v1610 = vpop.f32.mrf.mxu0
  %v1611 = vadd.f32 %v657, %v1610
  %v1612 = vpop.f32.mrf.mxu0
  %v1613 = vadd.f32 %v661, %v1612
  %1614 = vmatprep.mubr.bf16.mxu0 %v505
  %1615 = vmatmul.mubr.bf16.gmra.mxu0 %v504
  %v1616 = vpop.f32.mrf.mxu0
  %v1617 = vadd.f32 %v657, %v1616
  %v1618 = vpop.f32.mrf.mxu0
  %v1619 = vadd.f32 %v661, %v1618
  %v1620 = vpop.f32.mrf.mxu0
  %v1621 = vadd.f32 %v657, %v1620
  %v1622 = vpop.f32.mrf.mxu0
  %v1623 = vadd.f32 %v661, %v1622
  %1624 = vmatprep.mubr.bf16.mxu0 %v509
  %1625 = vmatmul.mubr.bf16.gmra.mxu0 %v508
  %v1626 = vpop.f32.mrf.mxu0
  %v1627 = vadd.f32 %v657, %v1626
  %v1628 = vpop.f32.mrf.mxu0
  %v1629 = vadd.f32 %v661, %v1628
  %v1630 = vpop.f32.mrf.mxu0
  %v1631 = vadd.f32 %v657, %v1630
  %v1632 = vpop.f32.mrf.mxu0
  %v1633 = vadd.f32 %v661, %v1632
  %1634 = vmatprep.mubr.bf16.mxu0 %v513
  %1635 = vmatmul.mubr.bf16.gmra.mxu0 %v512
  %v1636 = vpop.f32.mrf.mxu0
  %v1637 = vadd.f32 %v657, %v1636
  %v1638 = vpop.f32.mrf.mxu0
  %v1639 = vadd.f32 %v661, %v1638
  %v1640 = vpop.f32.mrf.mxu0
  %v1641 = vadd.f32 %v657, %v1640
  %v1642 = vpop.f32.mrf.mxu0
  %v1643 = vadd.f32 %v661, %v1642
  %1644 = vdwg.mxu0
  %1645 = vmatprep.subr.bf16.mxu0 %v1145
  %1646 = vmatpush1.bf16.msra.mxu0 %v1144
  %1647 = vmatprep.subr.bf16.mxu0 %v1141
  %1648 = vmatpush1.bf16.msra.mxu0 %v1140
  %1649 = vmatprep.subr.bf16.mxu0 %v1137
  %1650 = vmatpush1.bf16.msra.mxu0 %v1136
  %1651 = vmatprep.subr.bf16.mxu0 %v1133
  %1652 = vmatpush1.bf16.msra.mxu0 %v1132
  %1653 = vmatprep.subr.bf16.mxu0 %v1129
  %1654 = vmatpush1.bf16.msra.mxu0 %v1128
  %1655 = vmatprep.subr.bf16.mxu0 %v1125
  %1656 = vmatpush1.bf16.msra.mxu0 %v1124
  %1657 = vmatprep.subr.bf16.mxu0 %v1121
  %1658 = vmatpush1.bf16.msra.mxu0 %v1120
  %1659 = vmatprep.subr.bf16.mxu0 %v1117
  %1660 = vmatpush1.bf16.msra.mxu0 %v1116
  %1661 = vmatprep.subr.bf16.mxu0 %v1177
  %1662 = vmatpush2.bf16.msra.mxu0 %v1176
  %1663 = vmatprep.subr.bf16.mxu0 %v1173
  %1664 = vmatpush2.bf16.msra.mxu0 %v1172
  %1665 = vmatprep.subr.bf16.mxu0 %v1169
  %1666 = vmatpush2.bf16.msra.mxu0 %v1168
  %1667 = vmatprep.subr.bf16.mxu0 %v1165
  %1668 = vmatpush2.bf16.msra.mxu0 %v1164
  %1669 = vmatprep.subr.bf16.mxu0 %v1161
  %1670 = vmatpush2.bf16.msra.mxu0 %v1160
  %1671 = vmatprep.subr.bf16.mxu0 %v1157
  %1672 = vmatpush2.bf16.msra.mxu0 %v1156
  %1673 = vmatprep.subr.bf16.mxu0 %v1153
  %1674 = vmatpush2.bf16.msra.mxu0 %v1152
  %1675 = vmatprep.subr.bf16.mxu0 %v1149
  %1676 = vmatpush2.bf16.msra.mxu0 %v1148
  %1677 = vmatprep.mubr.bf16.mxu0 %v487
  %1678 = vmatmul.mubr.bf16.gmra.mxu0 %v486
  %v1679 = vpop.f32.mrf.mxu0
  %v1680 = vadd.f32 %v1567, %v1679
  %v1681 = vpop.f32.mrf.mxu0
  %v1682 = vadd.f32 %v1569, %v1681
  %v1683 = vpop.f32.mrf.mxu0
  %v1684 = vadd.f32 %v1571, %v1683
  %v1685 = vpop.f32.mrf.mxu0
  %v1686 = vadd.f32 %v1573, %v1685
  %1687 = vmatprep.mubr.bf16.mxu0 %v491
  %1688 = vmatmul.mubr.bf16.gmra.mxu0 %v490
  %v1689 = vpop.f32.mrf.mxu0
  %v1690 = vadd.f32 %v1577, %v1689
  %v1691 = vpop.f32.mrf.mxu0
  %v1692 = vadd.f32 %v1579, %v1691
  %v1693 = vpop.f32.mrf.mxu0
  %v1694 = vadd.f32 %v1581, %v1693
  %v1695 = vpop.f32.mrf.mxu0
  %v1696 = vadd.f32 %v1583, %v1695
  %1697 = vmatprep.mubr.bf16.mxu0 %v495
  %1698 = vmatmul.mubr.bf16.gmra.mxu0 %v494
  %v1699 = vpop.f32.mrf.mxu0
  %v1700 = vadd.f32 %v1587, %v1699
  %v1701 = vpop.f32.mrf.mxu0
  %v1702 = vadd.f32 %v1589, %v1701
  %v1703 = vpop.f32.mrf.mxu0
  %v1704 = vadd.f32 %v1591, %v1703
  %v1705 = vpop.f32.mrf.mxu0
  %v1706 = vadd.f32 %v1593, %v1705
  %1707 = vmatprep.mubr.bf16.mxu0 %v499
  %1708 = vmatmul.mubr.bf16.gmra.mxu0 %v498
  %v1709 = vpop.f32.mrf.mxu0
  %v1710 = vadd.f32 %v1597, %v1709
  %v1711 = vpop.f32.mrf.mxu0
  %v1712 = vadd.f32 %v1599, %v1711
  %v1713 = vpop.f32.mrf.mxu0
  %v1714 = vadd.f32 %v1601, %v1713
  %v1715 = vpop.f32.mrf.mxu0
  %v1716 = vadd.f32 %v1603, %v1715
  %1717 = vmatprep.mubr.bf16.mxu0 %v503
  %1718 = vmatmul.mubr.bf16.gmra.mxu0 %v502
  %v1719 = vpop.f32.mrf.mxu0
  %v1720 = vadd.f32 %v1607, %v1719
  %v1721 = vpop.f32.mrf.mxu0
  %v1722 = vadd.f32 %v1609, %v1721
  %v1723 = vpop.f32.mrf.mxu0
  %v1724 = vadd.f32 %v1611, %v1723
  %v1725 = vpop.f32.mrf.mxu0
  %v1726 = vadd.f32 %v1613, %v1725
  %1727 = vmatprep.mubr.bf16.mxu0 %v507
  %1728 = vmatmul.mubr.bf16.gmra.mxu0 %v506
  %v1729 = vpop.f32.mrf.mxu0
  %v1730 = vadd.f32 %v1617, %v1729
  %v1731 = vpop.f32.mrf.mxu0
  %v1732 = vadd.f32 %v1619, %v1731
  %v1733 = vpop.f32.mrf.mxu0
  %v1734 = vadd.f32 %v1621, %v1733
  %v1735 = vpop.f32.mrf.mxu0
  %v1736 = vadd.f32 %v1623, %v1735
  %1737 = vmatprep.mubr.bf16.mxu0 %v511
  %1738 = vmatmul.mubr.bf16.gmra.mxu0 %v510
  %v1739 = vpop.f32.mrf.mxu0
  %v1740 = vadd.f32 %v1627, %v1739
  %v1741 = vpop.f32.mrf.mxu0
  %v1742 = vadd.f32 %v1629, %v1741
  %v1743 = vpop.f32.mrf.mxu0
  %v1744 = vadd.f32 %v1631, %v1743
  %v1745 = vpop.f32.mrf.mxu0
  %v1746 = vadd.f32 %v1633, %v1745
  %1747 = vmatprep.mubr.bf16.mxu0 %v515
  %1748 = vmatmul.mubr.bf16.gmra.mxu0 %v514
  %v1749 = vpop.f32.mrf.mxu0
  %v1750 = vadd.f32 %v1637, %v1749
  %v1751 = vpop.f32.mrf.mxu0
  %v1752 = vadd.f32 %v1639, %v1751
  %v1753 = vpop.f32.mrf.mxu0
  %v1754 = vadd.f32 %v1641, %v1753
  %v1755 = vpop.f32.mrf.mxu0
  %v1756 = vadd.f32 %v1643, %v1755
  %1757 = vdwg.mxu0
  %v1758 = vmax.f32 %v1454, 0.0
  %v1759 = vmax.f32 %v1456, 0.0
  %v1760 = vmax.f32 %v1680, 0.0
  %v1761 = vmax.f32 %v1682, 0.0
  %v1762 = vmax.f32 %v1458, 0.0
  %v1763 = vmax.f32 %v1460, 0.0
  %v1764 = vmax.f32 %v1684, 0.0
  %v1765 = vmax.f32 %v1686, 0.0
  %v1766 = vmax.f32 %v1464, 0.0
  %v1767 = vmax.f32 %v1466, 0.0
  %v1768 = vmax.f32 %v1690, 0.0
  %v1769 = vmax.f32 %v1692, 0.0
  %v1770 = vmax.f32 %v1468, 0.0
  %v1771 = vmax.f32 %v1470, 0.0
  %v1772 = vmax.f32 %v1694, 0.0
  %v1773 = vmax.f32 %v1696, 0.0
  %v1774 = vmax.f32 %v1474, 0.0
  %v1775 = vmax.f32 %v1476, 0.0
  %v1776 = vmax.f32 %v1700, 0.0
  %v1777 = vmax.f32 %v1702, 0.0
  %v1778 = vmax.f32 %v1478, 0.0
  %v1779 = vmax.f32 %v1480, 0.0
  %v1780 = vmax.f32 %v1704, 0.0
  %v1781 = vmax.f32 %v1706, 0.0
  %v1782 = vmax.f32 %v1484, 0.0
  %v1783 = vmax.f32 %v1486, 0.0
  %v1784 = vmax.f32 %v1710, 0.0
  %v1785 = vmax.f32 %v1712, 0.0
  %v1786 = vmax.f32 %v1488, 0.0
  %v1787 = vmax.f32 %v1490, 0.0
  %v1788 = vmax.f32 %v1714, 0.0
  %v1789 = vmax.f32 %v1716, 0.0
  %v1790 = vmax.f32 %v1494, 0.0
  %v1791 = vmax.f32 %v1496, 0.0
  %v1792 = vmax.f32 %v1720, 0.0
  %v1793 = vmax.f32 %v1722, 0.0
  %v1794 = vmax.f32 %v1498, 0.0
  %v1795 = vmax.f32 %v1500, 0.0
  %v1796 = vmax.f32 %v1724, 0.0
  %v1797 = vmax.f32 %v1726, 0.0
  %v1798 = vmax.f32 %v1504, 0.0
  %v1799 = vmax.f32 %v1506, 0.0
  %v1800 = vmax.f32 %v1730, 0.0
  %v1801 = vmax.f32 %v1732, 0.0
  %v1802 = vmax.f32 %v1508, 0.0
  %v1803 = vmax.f32 %v1510, 0.0
  %v1804 = vmax.f32 %v1734, 0.0
  %v1805 = vmax.f32 %v1736, 0.0
  %v1806 = vmax.f32 %v1514, 0.0
  %v1807 = vmax.f32 %v1516, 0.0
  %v1808 = vmax.f32 %v1740, 0.0
  %v1809 = vmax.f32 %v1742, 0.0
  %v1810 = vmax.f32 %v1518, 0.0
  %v1811 = vmax.f32 %v1520, 0.0
  %v1812 = vmax.f32 %v1744, 0.0
  %v1813 = vmax.f32 %v1746, 0.0
  %v1814 = vmax.f32 %v1524, 0.0
  %v1815 = vmax.f32 %v1526, 0.0
  %v1816 = vmax.f32 %v1750, 0.0
  %v1817 = vmax.f32 %v1752, 0.0
  %v1818 = vmax.f32 %v1528, 0.0
  %v1819 = vmax.f32 %v1530, 0.0
  %v1820 = vmax.f32 %v1754, 0.0
  %v1821 = vmax.f32 %v1756, 0.0
  %v1822 = vpack.c.bf16 %v1762, %v1758
  %v1823 = vpack.c.bf16 %v1763, %v1759
  %v1824 = vpack.c.bf16 %v1764, %v1760
  %v1825 = vpack.c.bf16 %v1765, %v1761
  %v1826 = vpack.c.bf16 %v1770, %v1766
  %v1827 = vpack.c.bf16 %v1771, %v1767
  %v1828 = vpack.c.bf16 %v1772, %v1768
  %v1829 = vpack.c.bf16 %v1773, %v1769
  %v1830 = vpack.c.bf16 %v1778, %v1774
  %v1831 = vpack.c.bf16 %v1779, %v1775
  %v1832 = vpack.c.bf16 %v1780, %v1776
  %v1833 = vpack.c.bf16 %v1781, %v1777
  %v1834 = vpack.c.bf16 %v1786, %v1782
  %v1835 = vpack.c.bf16 %v1787, %v1783
  %v1836 = vpack.c.bf16 %v1788, %v1784
  %v1837 = vpack.c.bf16 %v1789, %v1785
  %v1838 = vpack.c.bf16 %v1794, %v1790
  %v1839 = vpack.c.bf16 %v1795, %v1791
  %v1840 = vpack.c.bf16 %v1796, %v1792
  %v1841 = vpack.c.bf16 %v1797, %v1793
  %v1842 = vpack.c.bf16 %v1802, %v1798
  %v1843 = vpack.c.bf16 %v1803, %v1799
  %v1844 = vpack.c.bf16 %v1804, %v1800
  %v1845 = vpack.c.bf16 %v1805, %v1801
  %v1846 = vpack.c.bf16 %v1810, %v1806
  %v1847 = vpack.c.bf16 %v1811, %v1807
  %v1848 = vpack.c.bf16 %v1812, %v1808
  %v1849 = vpack.c.bf16 %v1813, %v1809
  %v1850 = vpack.c.bf16 %v1818, %v1814
  %v1851 = vpack.c.bf16 %v1819, %v1815
  %v1852 = vpack.c.bf16 %v1820, %v1816
  %v1853 = vpack.c.bf16 %v1821, %v1817
  %v1854 = vld [vmem:[%s5] sm:$0xf]
  %v1855 = vld [vmem:[%s5 + $0x4] sm:$0xf]
  %v1856 = vld [vmem:[%s5 + $0x8] sm:$0xf]
  %v1857 = vld [vmem:[%s5 + $0xc] sm:$0xf]
  %v1858 = vld [vmem:[%s5 + $0x10] sm:$0xf]
  %v1859 = vld [vmem:[%s5 + $0x14] sm:$0xf]
  %v1860 = vld [vmem:[%s5 + $0x18] sm:$0xf]
  %v1861 = vld [vmem:[%s5 + $0x1c] sm:$0xf]
  %v1862 = vld [vmem:[%s5 + $0x20] sm:$0xf]
  %v1863 = vld [vmem:[%s5 + $0x24] sm:$0xf]
  %v1864 = vld [vmem:[%s5 + $0x28] sm:$0xf]
  %v1865 = vld [vmem:[%s5 + $0x2c] sm:$0xf]
  %v1866 = vld [vmem:[%s5 + $0x30] sm:$0xf]
  %v1867 = vld [vmem:[%s5 + $0x34] sm:$0xf]
  %v1868 = vld [vmem:[%s5 + $0x38] sm:$0xf]
  %v1869 = vld [vmem:[%s5 + $0x3c] sm:$0xf]
  %v1870 = vld [vmem:[%s5 + $0x40] sm:$0xf]
  %v1871 = vld [vmem:[%s5 + $0x44] sm:$0xf]
  %v1872 = vld [vmem:[%s5 + $0x48] sm:$0xf]
  %v1873 = vld [vmem:[%s5 + $0x4c] sm:$0xf]
  %v1874 = vld [vmem:[%s5 + $0x50] sm:$0xf]
  %v1875 = vld [vmem:[%s5 + $0x54] sm:$0xf]
  %v1876 = vld [vmem:[%s5 + $0x58] sm:$0xf]
  %v1877 = vld [vmem:[%s5 + $0x5c] sm:$0xf]
  %v1878 = vld [vmem:[%s5 + $0x60] sm:$0xf]
  %v1879 = vld [vmem:[%s5 + $0x64] sm:$0xf]
  %v1880 = vld [vmem:[%s5 + $0x68] sm:$0xf]
  %v1881 = vld [vmem:[%s5 + $0x6c] sm:$0xf]
  %v1882 = vld [vmem:[%s5 + $0x70] sm:$0xf]
  %v1883 = vld [vmem:[%s5 + $0x74] sm:$0xf]
  %v1884 = vld [vmem:[%s5 + $0x78] sm:$0xf]
  %v1885 = vld [vmem:[%s5 + $0x7c] sm:$0xf]
  %v1886 = vld [vmem:[%s5 + $0x80] sm:$0xf]
  %v1887 = vld [vmem:[%s5 + $0x84] sm:$0xf]
  %v1888 = vld [vmem:[%s5 + $0x88] sm:$0xf]
  %v1889 = vld [vmem:[%s5 + $0x8c] sm:$0xf]
  %v1890 = vld [vmem:[%s5 + $0x90] sm:$0xf]
  %v1891 = vld [vmem:[%s5 + $0x94] sm:$0xf]
  %v1892 = vld [vmem:[%s5 + $0x98] sm:$0xf]
  %v1893 = vld [vmem:[%s5 + $0x9c] sm:$0xf]
  %v1894 = vld [vmem:[%s5 + $0xa0] sm:$0xf]
  %v1895 = vld [vmem:[%s5 + $0xa4] sm:$0xf]
  %v1896 = vld [vmem:[%s5 + $0xa8] sm:$0xf]
  %v1897 = vld [vmem:[%s5 + $0xac] sm:$0xf]
  %v1898 = vld [vmem:[%s5 + $0xb0] sm:$0xf]
  %v1899 = vld [vmem:[%s5 + $0xb4] sm:$0xf]
  %v1900 = vld [vmem:[%s5 + $0xb8] sm:$0xf]
  %v1901 = vld [vmem:[%s5 + $0xbc] sm:$0xf]
  %v1902 = vld [vmem:[%s5 + $0xc0] sm:$0xf]
  %v1903 = vld [vmem:[%s5 + $0xc4] sm:$0xf]
  %v1904 = vld [vmem:[%s5 + $0xc8] sm:$0xf]
  %v1905 = vld [vmem:[%s5 + $0xcc] sm:$0xf]
  %v1906 = vld [vmem:[%s5 + $0xd0] sm:$0xf]
  %v1907 = vld [vmem:[%s5 + $0xd4] sm:$0xf]
  %v1908 = vld [vmem:[%s5 + $0xd8] sm:$0xf]
  %v1909 = vld [vmem:[%s5 + $0xdc] sm:$0xf]
  %v1910 = vld [vmem:[%s5 + $0xe0] sm:$0xf]
  %v1911 = vld [vmem:[%s5 + $0xe4] sm:$0xf]
  %v1912 = vld [vmem:[%s5 + $0xe8] sm:$0xf]
  %v1913 = vld [vmem:[%s5 + $0xec] sm:$0xf]
  %v1914 = vld [vmem:[%s5 + $0xf0] sm:$0xf]
  %v1915 = vld [vmem:[%s5 + $0xf4] sm:$0xf]
  %v1916 = vld [vmem:[%s5 + $0xf8] sm:$0xf]
  %v1917 = vld [vmem:[%s5 + $0xfc] sm:$0xf]
  %v1918 = vld [vmem:[%s6] sm:$0x1]
  %v1920 = vlaneseq
  %v1921 = vshrl.u32 %v1920, 7
  %v1922 = vsub.s32 0, %v1921
  %v1923 = vrot.slane %v1918, %v1922
  %v1989 = vunpack.c.l.b16 %v1854
  %v1990 = vunpack.c.l.b16 %v1855
  %v1991 = vunpack.c.l.b16 %v1856
  %v1992 = vunpack.c.l.b16 %v1857
  %v1993 = vunpack.c.l.b16 %v1858
  %v1994 = vunpack.c.l.b16 %v1859
  %v1995 = vunpack.c.l.b16 %v1860
  %v1996 = vunpack.c.l.b16 %v1861
  %v1997 = vunpack.c.l.b16 %v1862
  %v1998 = vunpack.c.l.b16 %v1863
  %v1999 = vunpack.c.l.b16 %v1864
  %v2000 = vunpack.c.l.b16 %v1865
  %v2001 = vunpack.c.l.b16 %v1866
  %v2002 = vunpack.c.l.b16 %v1867
  %v2003 = vunpack.c.l.b16 %v1868
  %v2004 = vunpack.c.l.b16 %v1869
  %v2005 = vunpack.c.l.b16 %v1870
  %v2006 = vunpack.c.l.b16 %v1871
  %v2007 = vunpack.c.l.b16 %v1872
  %v2008 = vunpack.c.l.b16 %v1873
  %v2009 = vunpack.c.l.b16 %v1874
  %v2010 = vunpack.c.l.b16 %v1875
  %v2011 = vunpack.c.l.b16 %v1876
  %v2012 = vunpack.c.l.b16 %v1877
  %v2013 = vunpack.c.l.b16 %v1878
  %v2014 = vunpack.c.l.b16 %v1879
  %v2015 = vunpack.c.l.b16 %v1880
  %v2016 = vunpack.c.l.b16 %v1881
  %v2017 = vunpack.c.l.b16 %v1882
  %v2018 = vunpack.c.l.b16 %v1883
  %v2019 = vunpack.c.l.b16 %v1884
  %v2020 = vunpack.c.l.b16 %v1885
  %v2021 = vunpack.c.l.b16 %v1886
  %v2022 = vunpack.c.l.b16 %v1887
  %v2023 = vunpack.c.l.b16 %v1888
  %v2024 = vunpack.c.l.b16 %v1889
  %v2025 = vunpack.c.l.b16 %v1890
  %v2026 = vunpack.c.l.b16 %v1891
  %v2027 = vunpack.c.l.b16 %v1892
  %v2028 = vunpack.c.l.b16 %v1893
  %v2029 = vunpack.c.l.b16 %v1894
  %v2030 = vunpack.c.l.b16 %v1895
  %v2031 = vunpack.c.l.b16 %v1896
  %v2032 = vunpack.c.l.b16 %v1897
  %v2033 = vunpack.c.l.b16 %v1898
  %v2034 = vunpack.c.l.b16 %v1899
  %v2035 = vunpack.c.l.b16 %v1900
  %v2036 = vunpack.c.l.b16 %v1901
  %v2037 = vunpack.c.l.b16 %v1902
  %v2038 = vunpack.c.l.b16 %v1903
  %v2039 = vunpack.c.l.b16 %v1904
  %v2040 = vunpack.c.l.b16 %v1905
  %v2041 = vunpack.c.l.b16 %v1906
  %v2042 = vunpack.c.l.b16 %v1907
  %v2043 = vunpack.c.l.b16 %v1908
  %v2044 = vunpack.c.l.b16 %v1909
  %v2045 = vunpack.c.l.b16 %v1910
  %v2046 = vunpack.c.l.b16 %v1911
  %v2047 = vunpack.c.l.b16 %v1912
  %v2048 = vunpack.c.l.b16 %v1913
  %v2049 = vunpack.c.l.b16 %v1914
  %v2050 = vunpack.c.l.b16 %v1915
  %v2051 = vunpack.c.l.b16 %v1916
  %v2052 = vunpack.c.l.b16 %v1917
  %v2053 = vpack.c.b16 %v1990, %v1989
  %v2054 = vpack.c.b16 %v1992, %v1991
  %v2055 = vpack.c.b16 %v1994, %v1993
  %v2056 = vpack.c.b16 %v1996, %v1995
  %v2057 = vpack.c.b16 %v1998, %v1997
  %v2058 = vpack.c.b16 %v2000, %v1999
  %v2059 = vpack.c.b16 %v2002, %v2001
  %v2060 = vpack.c.b16 %v2004, %v2003
  %v2061 = vpack.c.b16 %v2006, %v2005
  %v2062 = vpack.c.b16 %v2008, %v2007
  %v2063 = vpack.c.b16 %v2010, %v2009
  %v2064 = vpack.c.b16 %v2012, %v2011
  %v2065 = vpack.c.b16 %v2014, %v2013
  %v2066 = vpack.c.b16 %v2016, %v2015
  %v2067 = vpack.c.b16 %v2018, %v2017
  %v2068 = vpack.c.b16 %v2020, %v2019
  %v2069 = vpack.c.b16 %v2022, %v2021
  %v2070 = vpack.c.b16 %v2024, %v2023
  %v2071 = vpack.c.b16 %v2026, %v2025
  %v2072 = vpack.c.b16 %v2028, %v2027
  %v2073 = vpack.c.b16 %v2030, %v2029
  %v2074 = vpack.c.b16 %v2032, %v2031
  %v2075 = vpack.c.b16 %v2034, %v2033
  %v2076 = vpack.c.b16 %v2036, %v2035
  %v2077 = vpack.c.b16 %v2038, %v2037
  %v2078 = vpack.c.b16 %v2040, %v2039
  %v2079 = vpack.c.b16 %v2042, %v2041
  %v2080 = vpack.c.b16 %v2044, %v2043
  %v2081 = vpack.c.b16 %v2046, %v2045
  %v2082 = vpack.c.b16 %v2048, %v2047
  %v2083 = vpack.c.b16 %v2050, %v2049
  %v2084 = vpack.c.b16 %v2052, %v2051
  %2117 = vmatprep.subr.bf16.mxu0 0
  %2118 = vmatpush1.bf16.msra.mxu0 %v2060
  %2119 = vmatprep.subr.bf16.mxu0 0
  %2120 = vmatpush1.bf16.msra.mxu0 %v2059
  %2121 = vmatprep.subr.bf16.mxu0 0
  %2122 = vmatpush1.bf16.msra.mxu0 %v2058
  %2123 = vmatprep.subr.bf16.mxu0 0
  %2124 = vmatpush1.bf16.msra.mxu0 %v2057
  %2125 = vmatprep.subr.bf16.mxu0 0
  %2126 = vmatpush1.bf16.msra.mxu0 %v2056
  %2127 = vmatprep.subr.bf16.mxu0 0
  %2128 = vmatpush1.bf16.msra.mxu0 %v2055
  %2129 = vmatprep.subr.bf16.mxu0 0
  %2130 = vmatpush1.bf16.msra.mxu0 %v2054
  %2131 = vmatprep.subr.bf16.mxu0 0
  %2132 = vmatpush1.bf16.msra.mxu0 %v2053
  %2133 = vmatprep.subr.bf16.mxu0 0
  %2134 = vmatpush2.bf16.msra.mxu0 %v2068
  %2135 = vmatprep.subr.bf16.mxu0 0
  %2136 = vmatpush2.bf16.msra.mxu0 %v2067
  %2137 = vmatprep.subr.bf16.mxu0 0
  %2138 = vmatpush2.bf16.msra.mxu0 %v2066
  %2139 = vmatprep.subr.bf16.mxu0 0
  %2140 = vmatpush2.bf16.msra.mxu0 %v2065
  %2141 = vmatprep.subr.bf16.mxu0 0
  %2142 = vmatpush2.bf16.msra.mxu0 %v2064
  %2143 = vmatprep.subr.bf16.mxu0 0
  %2144 = vmatpush2.bf16.msra.mxu0 %v2063
  %2145 = vmatprep.subr.bf16.mxu0 0
  %2146 = vmatpush2.bf16.msra.mxu0 %v2062
  %2147 = vmatprep.subr.bf16.mxu0 0
  %2148 = vmatpush2.bf16.msra.mxu0 %v2061
  %2149 = vmatprep.mubr.bf16.mxu0 %v1823
  %2150 = vmatmul.mubr.bf16.gmra.mxu0 %v1822
  %v2151 = vpop.f32.mrf.mxu0
  %v2152 = vadd.f32 %v1923, %v2151
  %v2153 = vpop.f32.mrf.mxu0
  %v2154 = vpop.f32.mrf.mxu0
  %v2155 = vadd.f32 %v1923, %v2154
  %v2156 = vpop.f32.mrf.mxu0
  %2157 = vmatprep.mubr.bf16.mxu0 %v1827
  %2158 = vmatmul.mubr.bf16.gmra.mxu0 %v1826
  %v2159 = vpop.f32.mrf.mxu0
  %v2160 = vadd.f32 %v1923, %v2159
  %v2161 = vpop.f32.mrf.mxu0
  %v2162 = vpop.f32.mrf.mxu0
  %v2163 = vadd.f32 %v1923, %v2162
  %v2164 = vpop.f32.mrf.mxu0
  %2165 = vmatprep.mubr.bf16.mxu0 %v1831
  %2166 = vmatmul.mubr.bf16.gmra.mxu0 %v1830
  %v2167 = vpop.f32.mrf.mxu0
  %v2168 = vadd.f32 %v1923, %v2167
  %v2169 = vpop.f32.mrf.mxu0
  %v2170 = vpop.f32.mrf.mxu0
  %v2171 = vadd.f32 %v1923, %v2170
  %v2172 = vpop.f32.mrf.mxu0
  %2173 = vmatprep.mubr.bf16.mxu0 %v1835
  %2174 = vmatmul.mubr.bf16.gmra.mxu0 %v1834
  %v2175 = vpop.f32.mrf.mxu0
  %v2176 = vadd.f32 %v1923, %v2175
  %v2177 = vpop.f32.mrf.mxu0
  %v2178 = vpop.f32.mrf.mxu0
  %v2179 = vadd.f32 %v1923, %v2178
  %v2180 = vpop.f32.mrf.mxu0
  %2181 = vmatprep.mubr.bf16.mxu0 %v1839
  %2182 = vmatmul.mubr.bf16.gmra.mxu0 %v1838
  %v2183 = vpop.f32.mrf.mxu0
  %v2184 = vadd.f32 %v1923, %v2183
  %v2185 = vpop.f32.mrf.mxu0
  %v2186 = vpop.f32.mrf.mxu0
  %v2187 = vadd.f32 %v1923, %v2186
  %v2188 = vpop.f32.mrf.mxu0
  %2189 = vmatprep.mubr.bf16.mxu0 %v1843
  %2190 = vmatmul.mubr.bf16.gmra.mxu0 %v1842
  %v2191 = vpop.f32.mrf.mxu0
  %v2192 = vadd.f32 %v1923, %v2191
  %v2193 = vpop.f32.mrf.mxu0
  %v2194 = vpop.f32.mrf.mxu0
  %v2195 = vadd.f32 %v1923, %v2194
  %v2196 = vpop.f32.mrf.mxu0
  %2197 = vmatprep.mubr.bf16.mxu0 %v1847
  %2198 = vmatmul.mubr.bf16.gmra.mxu0 %v1846
  %v2199 = vpop.f32.mrf.mxu0
  %v2200 = vadd.f32 %v1923, %v2199
  %v2201 = vpop.f32.mrf.mxu0
  %v2202 = vpop.f32.mrf.mxu0
  %v2203 = vadd.f32 %v1923, %v2202
  %v2204 = vpop.f32.mrf.mxu0
  %2205 = vmatprep.mubr.bf16.mxu0 %v1851
  %2206 = vmatmul.mubr.bf16.gmra.mxu0 %v1850
  %v2207 = vpop.f32.mrf.mxu0
  %v2208 = vadd.f32 %v1923, %v2207
  %v2209 = vpop.f32.mrf.mxu0
  %v2210 = vpop.f32.mrf.mxu0
  %v2211 = vadd.f32 %v1923, %v2210
  %v2212 = vpop.f32.mrf.mxu0
  %2213 = vdwg.mxu0
  %2214 = vmatprep.subr.bf16.mxu0 0
  %2215 = vmatpush1.bf16.msra.mxu0 %v2076
  %2216 = vmatprep.subr.bf16.mxu0 0
  %2217 = vmatpush1.bf16.msra.mxu0 %v2075
  %2218 = vmatprep.subr.bf16.mxu0 0
  %2219 = vmatpush1.bf16.msra.mxu0 %v2074
  %2220 = vmatprep.subr.bf16.mxu0 0
  %2221 = vmatpush1.bf16.msra.mxu0 %v2073
  %2222 = vmatprep.subr.bf16.mxu0 0
  %2223 = vmatpush1.bf16.msra.mxu0 %v2072
  %2224 = vmatprep.subr.bf16.mxu0 0
  %2225 = vmatpush1.bf16.msra.mxu0 %v2071
  %2226 = vmatprep.subr.bf16.mxu0 0
  %2227 = vmatpush1.bf16.msra.mxu0 %v2070
  %2228 = vmatprep.subr.bf16.mxu0 0
  %2229 = vmatpush1.bf16.msra.mxu0 %v2069
  %2230 = vmatprep.subr.bf16.mxu0 0
  %2231 = vmatpush2.bf16.msra.mxu0 %v2084
  %2232 = vmatprep.subr.bf16.mxu0 0
  %2233 = vmatpush2.bf16.msra.mxu0 %v2083
  %2234 = vmatprep.subr.bf16.mxu0 0
  %2235 = vmatpush2.bf16.msra.mxu0 %v2082
  %2236 = vmatprep.subr.bf16.mxu0 0
  %2237 = vmatpush2.bf16.msra.mxu0 %v2081
  %2238 = vmatprep.subr.bf16.mxu0 0
  %2239 = vmatpush2.bf16.msra.mxu0 %v2080
  %2240 = vmatprep.subr.bf16.mxu0 0
  %2241 = vmatpush2.bf16.msra.mxu0 %v2079
  %2242 = vmatprep.subr.bf16.mxu0 0
  %2243 = vmatpush2.bf16.msra.mxu0 %v2078
  %2244 = vmatprep.subr.bf16.mxu0 0
  %2245 = vmatpush2.bf16.msra.mxu0 %v2077
  %2246 = vmatprep.mubr.bf16.mxu0 %v1825
  %2247 = vmatmul.mubr.bf16.gmra.mxu0 %v1824
  %v2248 = vpop.f32.mrf.mxu0
  %v2249 = vadd.f32 %v2152, %v2248
  %v2250 = vpop.f32.mrf.mxu0
  %v2251 = vpop.f32.mrf.mxu0
  %v2252 = vadd.f32 %v2155, %v2251
  %v2253 = vpop.f32.mrf.mxu0
  %2254 = vmatprep.mubr.bf16.mxu0 %v1829
  %2255 = vmatmul.mubr.bf16.gmra.mxu0 %v1828
  %v2256 = vpop.f32.mrf.mxu0
  %v2257 = vadd.f32 %v2160, %v2256
  %v2258 = vpop.f32.mrf.mxu0
  %v2259 = vpop.f32.mrf.mxu0
  %v2260 = vadd.f32 %v2163, %v2259
  %v2261 = vpop.f32.mrf.mxu0
  %2262 = vmatprep.mubr.bf16.mxu0 %v1833
  %2263 = vmatmul.mubr.bf16.gmra.mxu0 %v1832
  %v2264 = vpop.f32.mrf.mxu0
  %v2265 = vadd.f32 %v2168, %v2264
  %v2266 = vpop.f32.mrf.mxu0
  %v2267 = vpop.f32.mrf.mxu0
  %v2268 = vadd.f32 %v2171, %v2267
  %v2269 = vpop.f32.mrf.mxu0
  %2270 = vmatprep.mubr.bf16.mxu0 %v1837
  %2271 = vmatmul.mubr.bf16.gmra.mxu0 %v1836
  %v2272 = vpop.f32.mrf.mxu0
  %v2273 = vadd.f32 %v2176, %v2272
  %v2274 = vpop.f32.mrf.mxu0
  %v2275 = vpop.f32.mrf.mxu0
  %v2276 = vadd.f32 %v2179, %v2275
  %v2277 = vpop.f32.mrf.mxu0
  %2278 = vmatprep.mubr.bf16.mxu0 %v1841
  %2279 = vmatmul.mubr.bf16.gmra.mxu0 %v1840
  %v2280 = vpop.f32.mrf.mxu0
  %v2281 = vadd.f32 %v2184, %v2280
  %v2282 = vpop.f32.mrf.mxu0
  %v2283 = vpop.f32.mrf.mxu0
  %v2284 = vadd.f32 %v2187, %v2283
  %v2285 = vpop.f32.mrf.mxu0
  %2286 = vmatprep.mubr.bf16.mxu0 %v1845
  %2287 = vmatmul.mubr.bf16.gmra.mxu0 %v1844
  %v2288 = vpop.f32.mrf.mxu0
  %v2289 = vadd.f32 %v2192, %v2288
  %v2290 = vpop.f32.mrf.mxu0
  %v2291 = vpop.f32.mrf.mxu0
  %v2292 = vadd.f32 %v2195, %v2291
  %v2293 = vpop.f32.mrf.mxu0
  %2294 = vmatprep.mubr.bf16.mxu0 %v1849
  %2295 = vmatmul.mubr.bf16.gmra.mxu0 %v1848
  %v2296 = vpop.f32.mrf.mxu0
  %v2297 = vadd.f32 %v2200, %v2296
  %v2298 = vpop.f32.mrf.mxu0
  %v2299 = vpop.f32.mrf.mxu0
  %v2300 = vadd.f32 %v2203, %v2299
  %v2301 = vpop.f32.mrf.mxu0
  %2302 = vmatprep.mubr.bf16.mxu0 %v1853
  %2303 = vmatmul.mubr.bf16.gmra.mxu0 %v1852
  %v2304 = vpop.f32.mrf.mxu0
  %v2305 = vadd.f32 %v2208, %v2304
  %v2306 = vpop.f32.mrf.mxu0
  %v2307 = vpop.f32.mrf.mxu0
  %v2308 = vadd.f32 %v2211, %v2307
  %v2309 = vpop.f32.mrf.mxu0
  %2310 = vdwg.mxu0
  %v2311 = vmax.f32 %v2249, 0.0
  %v2312 = vmax.f32 %v2252, 0.0
  %v2313 = vmax.f32 %v2257, 0.0
  %v2314 = vmax.f32 %v2260, 0.0
  %v2315 = vmax.f32 %v2265, 0.0
  %v2316 = vmax.f32 %v2268, 0.0
  %v2317 = vmax.f32 %v2273, 0.0
  %v2318 = vmax.f32 %v2276, 0.0
  %v2319 = vmax.f32 %v2281, 0.0
  %v2320 = vmax.f32 %v2284, 0.0
  %v2321 = vmax.f32 %v2289, 0.0
  %v2322 = vmax.f32 %v2292, 0.0
  %v2323 = vmax.f32 %v2297, 0.0
  %v2324 = vmax.f32 %v2300, 0.0
  %v2325 = vmax.f32 %v2305, 0.0
  %v2326 = vmax.f32 %v2308, 0.0
  %2327 = vst [vmem:[%s7] sm:$0xff] %v2311
  %2328 = vst [vmem:[%s7 + $0x8] sm:$0xff] %v2312
  %2329 = vst [vmem:[%s7 + $0x10] sm:$0xff] %v2313
  %2330 = vst [vmem:[%s7 + $0x18] sm:$0xff] %v2314
  %2331 = vst [vmem:[%s7 + $0x20] sm:$0xff] %v2315
  %2332 = vst [vmem:[%s7 + $0x28] sm:$0xff] %v2316
  %2333 = vst [vmem:[%s7 + $0x30] sm:$0xff] %v2317
  %2334 = vst [vmem:[%s7 + $0x38] sm:$0xff] %v2318
  %2335 = vst [vmem:[%s7 + $0x40] sm:$0xff] %v2319
  %2336 = vst [vmem:[%s7 + $0x48] sm:$0xff] %v2320
  %2337 = vst [vmem:[%s7 + $0x50] sm:$0xff] %v2321
  %2338 = vst [vmem:[%s7 + $0x58] sm:$0xff] %v2322
  %2339 = vst [vmem:[%s7 + $0x60] sm:$0xff] %v2323
  %2340 = vst [vmem:[%s7 + $0x68] sm:$0xff] %v2324
  %2341 = vst [vmem:[%s7 + $0x70] sm:$0xff] %v2325
  %2342 = vst [vmem:[%s7 + $0x78] sm:$0xff] %v2326
  // Predicated region
  $region30: #{mlp4_forward.1} parent=0 // pred_check
    _
  $region31: #{mlp4_forward.1} parent=0 // pred_check_branch
    %2344 = sbr.rel (0) target = $region33
  $region32: #{mlp4_forward.1} parent=0 // pred_region
    _
  $region33: #{mlp4_forward.1} parent=0 // pred_fallthru
    _
  // Predicated region
  $region34: #{mlp4_forward.1} parent=0 // pred_check
    _
  $region35: #{mlp4_forward.1} parent=0 // pred_check_branch
    %2346 = sbr.rel (0) target = $region37
  $region36: #{mlp4_forward.1} parent=0 // pred_region
    _
  $region37: #{mlp4_forward.1} parent=0 // pred_fallthru
    _

</llo_original>
